<compile_context>
chip_gen: v5e
topology: v5e:2x2
jax: 0.10.0
libtpu: 0.0.40
codegen_flags: <defaults>
</compile_context>

<pallas_src>
import functools

import jax
import jax.numpy as jnp
from jax.experimental import pallas as pl
from jax.experimental.pallas import tpu as pltpu

NEG_SLOPE = 0.01                  # nn.LeakyReLU default
TM = 128                          # destination-node tile (sublane axis)
TK = 128                          # source-node tile (lane axis of adj); multiple of 128
OUT_PAD = 128                     # lane-dense padded logits width (real logits = 2)
VMEM_LIMIT = 32 * 1024 * 1024     # explicit scoped-VMEM budget (safe on v5e/v6e/v7x)


def _leaky(x):
    return jnp.where(x > 0, x, NEG_SLOPE * x)


def _round_up(x, m):
    return ((x + m - 1) // m) * m


# ---------------------------------------------------------------------------
# Kernels
# ---------------------------------------------------------------------------
def embed_kernel(feat_ref, wcomb_ref, bcomb_ref, win_ref, bin_ref, o_ref):
    # leaky([des|num|cat] @ W_blockdiag + b) == concat of the three branch
    # activations (block-diagonal structure), then the input Linear + leaky.
    h = _leaky(jnp.dot(feat_ref[...], wcomb_ref[...],
                       preferred_element_type=jnp.float32) + bcomb_ref[...])
    o_ref[...] = _leaky(jnp.dot(h.astype(jnp.bfloat16), win_ref[...],
                                preferred_element_type=jnp.float32)
                        + bin_ref[...]).astype(o_ref.dtype)


def _rgcn_accumulate(adj_ref, xs_ref, agg_ref, num_relations):
    """agg[r] += A_r[dst_tile, src_tile] @ x[src_tile], accumulated over k."""
    @pl.when(pl.program_id(1) == 0)
    def _():
        agg_ref[...] = jnp.zeros_like(agg_ref)

    xs = xs_ref[...]                           # bf16 MXU operand, f32 accumulation
    for r in range(num_relations):             # static loop, num_relations == 2
        agg_ref[r] = agg_ref[r] + jnp.dot(adj_ref[r], xs,
                                          preferred_element_type=jnp.float32)


def _rgcn_combine(xd_ref, wrel_ref, root_ref, b_ref, agg_ref, num_relations):
    """x[dst_tile] @ root + bias + sum_r agg[r] @ W_r  (PyG RGCNConv, mean aggr)."""
    out = jnp.dot(xd_ref[...], root_ref[...],
                  preferred_element_type=jnp.float32) + b_ref[...]
    for r in range(num_relations):
        out = out + jnp.dot(agg_ref[r].astype(jnp.bfloat16), wrel_ref[r],
                            preferred_element_type=jnp.float32)
    return out


def rgcn_kernel(adj_ref, xs_ref, xd_ref, wrel_ref, root_ref, b_ref,
                o_ref, agg_ref, *, num_relations):
    _rgcn_accumulate(adj_ref, xs_ref, agg_ref, num_relations)

    @pl.when(pl.program_id(1) == pl.num_programs(1) - 1)
    def _():
        o_ref[...] = _rgcn_combine(xd_ref, wrel_ref, root_ref, b_ref,
                                   agg_ref, num_relations).astype(o_ref.dtype)


def rgcn_head_kernel(adj_ref, xs_ref, xd_ref, wrel_ref, root_ref, b_ref,
                     w1_ref, b1_ref, w2_ref, b2_ref,
                     o_ref, agg_ref, *, num_relations):
    _rgcn_accumulate(adj_ref, xs_ref, agg_ref, num_relations)

    @pl.when(pl.program_id(1) == pl.num_programs(1) - 1)
    def _():
        x2 = _rgcn_combine(xd_ref, wrel_ref, root_ref, b_ref,
                           agg_ref, num_relations)
        h = _leaky(jnp.dot(x2.astype(jnp.bfloat16), w1_ref[...],
                           preferred_element_type=jnp.float32) + b1_ref[...])
        # Lane-dense padded logits (OUT_PAD wide); real logits are cols 0:2.
        o_ref[...] = jnp.dot(h.astype(jnp.bfloat16), w2_ref[...],
                             preferred_element_type=jnp.float32) + b2_ref[...]


# ---------------------------------------------------------------------------
# pallas_call wrappers
# ---------------------------------------------------------------------------
def input_embed(feat, w_comb, b_comb, w_in, b_in, *, tm=TM):
    n_pad, d_pad = feat.shape
    emb = w_in.shape[1]
    cost = pl.CostEstimate(
        flops=2 * n_pad * emb * (d_pad + emb),
        transcendentals=0,
        bytes_accessed=2 * (n_pad * d_pad + d_pad * emb + emb * emb + n_pad * emb)
                       + 4 * 2 * emb)
    return pl.pallas_call(
        embed_kernel,
        out_shape=jax.ShapeDtypeStruct((n_pad, emb), jnp.bfloat16),
        grid_spec=pltpu.PrefetchScalarGridSpec(
            num_scalar_prefetch=0,
            grid=(n_pad // tm,),
            in_specs=[
                pl.BlockSpec((tm, d_pad), lambda i: (i, 0)),
                pl.BlockSpec((d_pad, emb), lambda i: (0, 0)),
                pl.BlockSpec((1, emb), lambda i: (0, 0)),
                pl.BlockSpec((emb, emb), lambda i: (0, 0)),
                pl.BlockSpec((1, emb), lambda i: (0, 0)),
            ],
            out_specs=pl.BlockSpec((tm, emb), lambda i: (i, 0)),
        ),
        compiler_params=pltpu.CompilerParams(
            dimension_semantics=("parallel",),
            vmem_limit_bytes=VMEM_LIMIT),
        cost_estimate=cost,
    )(feat, w_comb, b_comb, w_in, b_in)


def _rgcn_in_specs(num_rel, emb, tm, tk):
    return [
        pl.BlockSpec((num_rel, tm, tk), lambda i, k: (0, i, k)),    # adj tile (bf16)
        pl.BlockSpec((tk, emb), lambda i, k: (k, 0)),               # x, source tile (bf16)
        pl.BlockSpec((tm, emb), lambda i, k: (i, 0)),               # x, dest tile (bf16)
        pl.BlockSpec((num_rel, emb, emb), lambda i, k: (0, 0, 0)),  # W_rel (resident)
        pl.BlockSpec((emb, emb), lambda i, k: (0, 0)),              # root (resident)
        pl.BlockSpec((1, emb), lambda i, k: (0, 0)),                # bias (resident)
    ]


def rgcn_layer(x, adj, wrel_bf, root_bf, bias, *, tm=TM, tk=TK):
    n_pad, emb = x.shape
    num_rel = adj.shape[0]
    cost = pl.CostEstimate(
        flops=2 * num_rel * n_pad * n_pad * emb
              + 2 * n_pad * emb * emb * (num_rel + 1),
        transcendentals=0,
        bytes_accessed=2 * num_rel * n_pad * n_pad
                       + 2 * (3 * n_pad * emb + (num_rel + 1) * emb * emb)
                       + 4 * emb)
    return pl.pallas_call(
        functools.partial(rgcn_kernel, num_relations=num_rel),
        out_shape=jax.ShapeDtypeStruct((n_pad, emb), jnp.bfloat16),
        grid_spec=pltpu.PrefetchScalarGridSpec(
            num_scalar_prefetch=0,
            grid=(n_pad // tm, n_pad // tk),
            in_specs=_rgcn_in_specs(num_rel, emb, tm, tk),
            out_specs=pl.BlockSpec((tm, emb), lambda i, k: (i, 0)),
            scratch_shapes=[pltpu.VMEM((num_rel, tm, emb), jnp.float32)],
        ),
        compiler_params=pltpu.CompilerParams(
            dimension_semantics=("parallel", "arbitrary"),
            vmem_limit_bytes=VMEM_LIMIT),
        cost_estimate=cost,
    )(adj, x, x, wrel_bf, root_bf, bias)


def rgcn_head_layer(x, adj, wrel_bf, root_bf, bias, w1_bf, b1, w2_pad, b2_pad,
                    *, tm=TM, tk=TK):
    n_pad, emb = x.shape
    num_rel = adj.shape[0]
    cost = pl.CostEstimate(
        flops=2 * num_rel * n_pad * n_pad * emb
              + 2 * n_pad * emb * emb * (num_rel + 2)
              + 2 * n_pad * emb * OUT_PAD,
        transcendentals=0,
        bytes_accessed=2 * num_rel * n_pad * n_pad
                       + 2 * (2 * n_pad * emb + (num_rel + 2) * emb * emb
                              + emb * OUT_PAD)
                       + 4 * n_pad * OUT_PAD)
    in_specs = _rgcn_in_specs(num_rel, emb, tm, tk) + [
        pl.BlockSpec((emb, emb), lambda i, k: (0, 0)),        # W_out1 (bf16, resident)
        pl.BlockSpec((1, emb), lambda i, k: (0, 0)),          # b_out1
        pl.BlockSpec((emb, OUT_PAD), lambda i, k: (0, 0)),    # W_out2 (bf16, zero-padded)
        pl.BlockSpec((1, OUT_PAD), lambda i, k: (0, 0)),      # b_out2 (zero-padded)
    ]
    return pl.pallas_call(
        functools.partial(rgcn_head_kernel, num_relations=num_rel),
        out_shape=jax.ShapeDtypeStruct((n_pad, OUT_PAD), jnp.float32),
        grid_spec=pltpu.PrefetchScalarGridSpec(
            num_scalar_prefetch=0,
            grid=(n_pad // tm, n_pad // tk),
            in_specs=in_specs,
            out_specs=pl.BlockSpec((tm, OUT_PAD), lambda i, k: (i, 0)),
            scratch_shapes=[pltpu.VMEM((num_rel, tm, emb), jnp.float32)],
        ),
        compiler_params=pltpu.CompilerParams(
            dimension_semantics=("parallel", "arbitrary"),
            vmem_limit_bytes=VMEM_LIMIT),
        cost_estimate=cost,
    )(adj, x, x, wrel_bf, root_bf, bias, w1_bf, b1, w2_pad, b2_pad)


# ---------------------------------------------------------------------------
# Glue: adjacency, weight packing, parameter init, forward
# ---------------------------------------------------------------------------
def build_adjacency(edge_index, edge_type, n_pad, num_relations):
    """A[r, dst, src] = 1/in_deg_r(dst)  (PyG RGCNConv mean aggregation), bf16."""
    src, dst = edge_index[0], edge_index[1]
    adjs = []
    for r in range(num_relations):
        w = (edge_type == r).astype(jnp.float32)
        a = jnp.zeros((n_pad, n_pad), jnp.float32).at[dst, src].add(w)
        deg = a.sum(axis=1, keepdims=True)
        a = a / jnp.maximum(deg, 1.0)
        adjs.append(a)
    # bf16 halves the dominant HBM stream; MXU accumulation stays f32 in-kernel.
    return jnp.stack(adjs).astype(jnp.bfloat16)


def pack_input_weights(p, des_size, num_prop_size, cat_prop_size, d_pad):
    """Block-diagonal weight so [des|num|cat] branches + concat become one matmul."""
    emb = p["w_in"].shape[0]
    chunk = emb // 3
    w = jnp.zeros((d_pad, emb), jnp.float32)
    w = w.at[:des_size, :chunk].set(p["w_des"])
    off = des_size
    w = w.at[off:off + num_prop_size, chunk:2 * chunk].set(p["w_num"])
    off += num_prop_size
    w = w.at[off:off + cat_prop_size, 2 * chunk:].set(p["w_cat"])
    b = jnp.concatenate([p["b_des"], p["b_num"], p["b_cat"]], axis=1)
    return w.astype(jnp.bfloat16), b


def pack_output_weights(p):
    """Zero-pad the 2-wide logits projection to OUT_PAD lanes (unmasked stores)."""
    emb, n_out = p["w_out2"].shape
    w = jnp.zeros((emb, OUT_PAD), jnp.float32).at[:, :n_out].set(p["w_out2"])
    b = jnp.zeros((1, OUT_PAD), jnp.float32).at[:, :n_out].set(p["b_out2"])
    return w.astype(jnp.bfloat16), b


def init_params(key, des_size=768, num_prop_size=4, cat_prop_size=3,
                embedding_dimension=192, num_relations=2):
    # NOTE: embedding_dimension must be divisible by 3 (the module concatenates
    # three int(emb/3)-wide branches into an emb-wide vector).
    assert embedding_dimension % 3 == 0
    chunk = embedding_dimension // 3
    emb = embedding_dimension
    ks = jax.random.split(key, 16)

    def lin(k, fan_in, fan_out):
        bound = 1.0 / jnp.sqrt(float(fan_in))
        return jax.random.uniform(k, (fan_in, fan_out), jnp.float32, -bound, bound)

    return {
        "w_des": lin(ks[0], des_size, chunk),
        "b_des": jnp.zeros((1, chunk), jnp.float32),
        "w_num": lin(ks[1], num_prop_size, chunk),
        "b_num": jnp.zeros((1, chunk), jnp.float32),
        "w_cat": lin(ks[2], cat_prop_size, chunk),
        "b_cat": jnp.zeros((1, chunk), jnp.float32),
        "w_in": lin(ks[3], emb, emb),
        "b_in": jnp.zeros((1, emb), jnp.float32),
        "w_rel": jnp.stack([lin(ks[4 + r], emb, emb) for r in range(num_relations)]),
        "root": lin(ks[8], emb, emb),
        "rgcn_bias": jnp.zeros((1, emb), jnp.float32),
        "w_out1": lin(ks[9], emb, emb),
        "b_out1": jnp.zeros((1, emb), jnp.float32),
        "w_out2": lin(ks[10], emb, 2),
        "b_out2": jnp.zeros((1, 2), jnp.float32),
    }


def botrgcn_forward(des, tweet, num_prop, cat_prop, edge_index, edge_type, params,
                    *, tm=TM, tk=TK):
    del tweet  # accepted but unused by BotRGCN.forward
    n = des.shape[0]
    num_rel = params["w_rel"].shape[0]
    n_out = params["w_out2"].shape[1]

    n_pad = _round_up(_round_up(n, tm), tk)
    feat = jnp.concatenate([des, num_prop, cat_prop], axis=1)
    d_in = feat.shape[1]
    d_pad = _round_up(d_in, 128)
    feat = jnp.pad(feat, ((0, n_pad - n), (0, d_pad - d_in))).astype(jnp.bfloat16)

    w_comb, b_comb = pack_input_weights(params, des.shape[1],
                                        num_prop.shape[1], cat_prop.shape[1], d_pad)
    w2_pad, b2_pad = pack_output_weights(params)
    adj = build_adjacency(edge_index, edge_type, n_pad, num_rel)

    # bf16 matmul operands (MXU fast path); biases / accumulation stay f32.
    w_in_bf = params["w_in"].astype(jnp.bfloat16)
    wrel_bf = params["w_rel"].astype(jnp.bfloat16)
    root_bf = params["root"].astype(jnp.bfloat16)
    w1_bf = params["w_out1"].astype(jnp.bfloat16)

    x = input_embed(feat, w_comb, b_comb, w_in_bf, params["b_in"], tm=tm)
    x = rgcn_layer(x, adj, wrel_bf, root_bf, params["rgcn_bias"], tm=tm, tk=tk)
    # TODO(synk): F.dropout(p=0.3) is identity at inference; a training path
    # would add pltpu.prng_seed / prng_random_bits masking here.
    logits = rgcn_head_layer(x, adj, wrel_bf, root_bf, params["rgcn_bias"],
                             w1_bf, params["b_out1"], w2_pad, b2_pad, tm=tm, tk=tk)
    return logits[:n, :n_out]


def reference_forward(des, num_prop, cat_prop, adj_bf16, params):
    """Pure-JAX reference mirroring the kernel's bf16 truncation points, so the
    residual difference is only MXU accumulation order."""
    n = des.shape[0]
    num_rel = params["w_rel"].shape[0]
    bf = lambda a: a.astype(jnp.bfloat16).astype(jnp.float32)

    d = _leaky(bf(des) @ bf(params["w_des"]) + params["b_des"])
    np_ = _leaky(bf(num_prop) @ bf(params["w_num"]) + params["b_num"])
    c = _leaky(bf(cat_prop) @ bf(params["w_cat"]) + params["b_cat"])
    x = jnp.concatenate([d, np_, c], axis=1)
    x = bf(_leaky(bf(x) @ bf(params["w_in"]) + params["b_in"]))   # embed output (bf16)
    a = adj_bf16[:, :n, :n].astype(jnp.float32)

    def rgcn(x_bf):
        out = x_bf @ bf(params["root"]) + params["rgcn_bias"]
        for r in range(num_rel):
            agg = a[r] @ x_bf
            out = out + bf(agg) @ bf(params["w_rel"][r])
        return out

    x1 = bf(rgcn(x))       # layer-1 output stored bf16
    x2 = rgcn(x1)          # layer-2, kept f32 inside the fused head
    h = _leaky(bf(x2) @ bf(params["w_out1"]) + params["b_out1"])
    return bf(h) @ bf(params["w_out2"]) + params["b_out2"]


# ---------------------------------------------------------------------------
if __name__ == "__main__":
    key = jax.random.PRNGKey(0)
    k_des, k_tw, k_num, k_cat, k_ei, k_et, k_par = jax.random.split(key, 7)

    N_NODES = 200          # padded to 256 inside the forward -> 2x2 RGCN grid
    N_EDGES = 800
    DES_SIZE = 768
    NUM_PROP = 4
    CAT_PROP = 3
    EMB = 192              # divisible by 3 (module concatenates three emb//3 branches)
    NUM_REL = 2

    des = jax.random.normal(k_des, (N_NODES, DES_SIZE), jnp.float32)
    tweet = jax.random.normal(k_tw, (N_NODES, DES_SIZE), jnp.float32)     # unused
    num_prop = jax.random.normal(k_num, (N_NODES, NUM_PROP), jnp.float32)
    cat_prop = jax.random.normal(k_cat, (N_NODES, CAT_PROP), jnp.float32)
    edge_index = jax.random.randint(k_ei, (2, N_EDGES), 0, N_NODES, jnp.int32)
    edge_type = jax.random.randint(k_et, (N_EDGES,), 0, NUM_REL, jnp.int32)

    params = init_params(k_par, DES_SIZE, NUM_PROP, CAT_PROP, EMB, NUM_REL)

    out = botrgcn_forward(des, tweet, num_prop, cat_prop,
                          edge_index, edge_type, params)
    out = jax.block_until_ready(out)
    assert out.shape == (N_NODES, 2), out.shape
    assert bool(jnp.all(jnp.isfinite(out)))

    # Cross-check against a pure-JAX reference mirroring the kernel's bf16
    # truncation points (tolerance covers accumulation-order differences).
    adj_ref = build_adjacency(edge_index, edge_type,
                              _round_up(_round_up(N_NODES, TM), TK), NUM_REL)
    ref = reference_forward(des, num_prop, cat_prop, adj_ref, params)
    assert bool(jnp.allclose(out, ref, rtol=2e-2, atol=2e-2)), \
        float(jnp.max(jnp.abs(out - ref)))

    print("KERNEL_OK")
</pallas_src>

<mosaic_0001>
module attributes {stable_mosaic.version = 11 : i64} {
  func.func @embed_kernel(%arg0: i32, %arg1: memref<128x896xbf16, #tpu.memory_space<vmem>>, %arg2: memref<896x192xbf16, #tpu.memory_space<vmem>>, %arg3: memref<1x192xf32, #tpu.memory_space<vmem>>, %arg4: memref<192x192xbf16, #tpu.memory_space<vmem>>, %arg5: memref<1x192xf32, #tpu.memory_space<vmem>>, %arg6: memref<128x192xbf16, #tpu.memory_space<vmem>>) attributes {dimension_semantics = [#tpu.dimension_semantics<parallel>], iteration_bounds = array<i64: 2>, scalar_prefetch = 0 : i64, scratch_operands = 0 : i64, tpu.core_type = #tpu.core_type<tc>, window_params = [{transform_indices = @transform_0, window_bounds = array<i64: 128, 896>}, {pipeline_mode = #tpu.pipeline_mode<synchronous>, transform_indices = @transform_1, window_bounds = array<i64: 896, 192>}, {pipeline_mode = #tpu.pipeline_mode<synchronous>, transform_indices = @transform_2, window_bounds = array<i64: 1, 192>}, {pipeline_mode = #tpu.pipeline_mode<synchronous>, transform_indices = @transform_3, window_bounds = array<i64: 192, 192>}, {pipeline_mode = #tpu.pipeline_mode<synchronous>, transform_indices = @transform_4, window_bounds = array<i64: 1, 192>}, {transform_indices = @transform_5, window_bounds = array<i64: 128, 192>}]} {
    %c0 = arith.constant 0 : index
    %c0_0 = arith.constant 0 : index
    %0 = vector.load %arg1[%c0, %c0_0] : memref<128x896xbf16, #tpu.memory_space<vmem>>, vector<128x896xbf16>
    %c0_1 = arith.constant 0 : index
    %c0_2 = arith.constant 0 : index
    %1 = vector.load %arg2[%c0_1, %c0_2] : memref<896x192xbf16, #tpu.memory_space<vmem>>, vector<896x192xbf16>
    %cst = arith.constant dense<0.000000e+00> : vector<128x192xf32>
    %2 = tpu.matmul %0, %1, %cst {dimension_numbers = #tpu.dot_dimension_numbers<[1], [0], [0], [1], [0, 0, 1, 1], [], []>} : vector<128x896xbf16>, vector<896x192xbf16>, vector<128x192xf32> -> vector<128x192xf32>
    %c0_3 = arith.constant 0 : index
    %c0_4 = arith.constant 0 : index
    %3 = vector.load %arg3[%c0_3, %c0_4] : memref<1x192xf32, #tpu.memory_space<vmem>>, vector<1x192xf32>
    %4 = vector.broadcast %3 : vector<1x192xf32> to vector<128x192xf32>
    %5 = arith.addf %2, %4 : vector<128x192xf32>
    %cst_5 = arith.constant 0.000000e+00 : f32
    %6 = vector.broadcast %cst_5 : f32 to vector<128x192xf32>
    %7 = arith.cmpf ogt, %5, %6 : vector<128x192xf32>
    %cst_6 = arith.constant 0.00999999977 : f32
    %8 = vector.broadcast %cst_6 : f32 to vector<128x192xf32>
    %9 = arith.mulf %8, %5 : vector<128x192xf32>
    %10 = arith.select %7, %5, %9 : vector<128x192xi1>, vector<128x192xf32>
    %11 = arith.truncf %10 : vector<128x192xf32> to vector<128x192xbf16>
    %c0_7 = arith.constant 0 : index
    %c0_8 = arith.constant 0 : index
    %12 = vector.load %arg4[%c0_7, %c0_8] : memref<192x192xbf16, #tpu.memory_space<vmem>>, vector<192x192xbf16>
    %cst_9 = arith.constant dense<0.000000e+00> : vector<128x192xf32>
    %13 = tpu.matmul %11, %12, %cst_9 {dimension_numbers = #tpu.dot_dimension_numbers<[1], [0], [0], [1], [0, 0, 1, 1], [], []>} : vector<128x192xbf16>, vector<192x192xbf16>, vector<128x192xf32> -> vector<128x192xf32>
    %c0_10 = arith.constant 0 : index
    %c0_11 = arith.constant 0 : index
    %14 = vector.load %arg5[%c0_10, %c0_11] : memref<1x192xf32, #tpu.memory_space<vmem>>, vector<1x192xf32>
    %15 = vector.broadcast %14 : vector<1x192xf32> to vector<128x192xf32>
    %16 = arith.addf %13, %15 : vector<128x192xf32>
    %cst_12 = arith.constant 0.000000e+00 : f32
    %17 = vector.broadcast %cst_12 : f32 to vector<128x192xf32>
    %18 = arith.cmpf ogt, %16, %17 : vector<128x192xf32>
    %cst_13 = arith.constant 0.00999999977 : f32
    %19 = vector.broadcast %cst_13 : f32 to vector<128x192xf32>
    %20 = arith.mulf %19, %16 : vector<128x192xf32>
    %21 = arith.select %18, %16, %20 : vector<128x192xi1>, vector<128x192xf32>
    %22 = arith.truncf %21 : vector<128x192xf32> to vector<128x192xbf16>
    %c0_14 = arith.constant 0 : index
    %c0_15 = arith.constant 0 : index
    %23 = vector.load %arg6[%c0_14, %c0_15] : memref<128x192xbf16, #tpu.memory_space<vmem>>, vector<128x192xbf16>
    tpu.vector_store %arg6[%c0_14, %c0_15], %22 {strides = array<i32>} : memref<128x192xbf16, #tpu.memory_space<vmem>>, vector<128x192xbf16>,
    return
  }
  func.func @transform_0(%arg0: i32) -> (i32, i32) {
    %c0_i32 = arith.constant 0 : i32
    %c0_i32_0 = arith.constant 0 : i32
    return %arg0, %c0_i32 : i32, i32
  }
  func.func @transform_1(%arg0: i32) -> (i32, i32) {
    %c0_i32 = arith.constant 0 : i32
    %c0_i32_0 = arith.constant 0 : i32
    %c0_i32_1 = arith.constant 0 : i32
    return %c0_i32, %c0_i32_0 : i32, i32
  }
  func.func @transform_2(%arg0: i32) -> (i32, i32) {
    %c0_i32 = arith.constant 0 : i32
    %c0_i32_0 = arith.constant 0 : i32
    %c0_i32_1 = arith.constant 0 : i32
    return %c0_i32, %c0_i32_0 : i32, i32
  }
  func.func @transform_3(%arg0: i32) -> (i32, i32) {
    %c0_i32 = arith.constant 0 : i32
    %c0_i32_0 = arith.constant 0 : i32
    %c0_i32_1 = arith.constant 0 : i32
    return %c0_i32, %c0_i32_0 : i32, i32
  }
  func.func @transform_4(%arg0: i32) -> (i32, i32) {
    %c0_i32 = arith.constant 0 : i32
    %c0_i32_0 = arith.constant 0 : i32
    %c0_i32_1 = arith.constant 0 : i32
    return %c0_i32, %c0_i32_0 : i32, i32
  }
  func.func @transform_5(%arg0: i32) -> (i32, i32) {
    %c0_i32 = arith.constant 0 : i32
    %c0_i32_0 = arith.constant 0 : i32
    return %arg0, %c0_i32 : i32, i32
  }
}

</mosaic_0001>

<llo_original>
// kernel: tpu_custom_call.1
$region0: #{tpu_custom_call.1}
  #allocation0 [shape = 'u32[]', space=smem, size = 0x4, offset = 0x4, fixed_abs, tag = 'smem constant byte address 0x4 - core index']
  #allocation1 [shape = 'u32[72,128]{1,0:T(1,128)}', space=vmem, size = 0x9000, scoped, tag = 'internal scratch']
  %s0 = inlined_call_operand.vmem [shape: bf16[256,896], index: 0, kind: input, shape index: {}]
  %s1 = inlined_call_operand.vmem [shape: bf16[896,192], index: 1, kind: input, shape index: {}]
  %s2 = inlined_call_operand.vmem [shape: f32[1,192], index: 2, kind: input, shape index: {}]
  %s3 = inlined_call_operand.vmem [shape: bf16[192,192], index: 3, kind: input, shape index: {}]
  %s4 = inlined_call_operand.vmem [shape: f32[1,192], index: 4, kind: input, shape index: {}]
  %s5 = inlined_call_operand.vmem [shape: bf16[256,192], index: 5, kind: output, shape index: {}]
  %s6 = sld [smem:[#allocation0]]
  $region53: #{tpu_custom_call.1} parent=0
    _
  %s8 = ssub.s32 1, %s6
  %s9 = scalar_select 0, %s8, %s6
  loop: start=0, step=1, limit=4
  $region2: #{tpu_custom_call.1} parent=0 // loop_pre_header
    _
  $region3: #{tpu_custom_call.1} parent=0 // loop_header
    %s11 = sphi 0, %s15
    %p12 = scmp.ge.s32.totalorder %s11, 4
    %s21 = sphi 0, %s23
    %s24 = sphi 0, %s21
    %s25 = sphi 0, %s24
    %s41 = sphi 0, %s25
    %s45 = sphi 0, %s45
    %s47 = sphi 0, %s45
    %s48 = sphi 0, %s47
    %s62 = sphi 0, %s48
    %s66 = sphi 0, %s66
    %s68 = sphi 0, %s66
    %s69 = sphi 0, %s68
    %s83 = sphi 0, %s69
    %s87 = sphi 0, %s87
    %s89 = sphi 0, %s87
    %s90 = sphi 0, %s89
    %s104 = sphi 0, %s90
    %s108 = sphi 0, %s108
    %s110 = sphi 0, %s108
    %s111 = sphi 0, %s110
    %s125 = sphi 0, %s111
    %s131 = sphi 0, %s133
    %s134 = sphi 0, %s131
    %s135 = sphi 0, %s134
    %s151 = sphi 0, %s135
  $region4: #{tpu_custom_call.1} parent=0 // loop_header_branch
    %14 = sbr.rel (%p12) target = $region8
  $region5: #{tpu_custom_call.1} parent=0 // loop_body
    %s16 = ssub.s32 %s11, 1
    %s17 = ssub.s32 %s11, 2
    %s18 = sadd.s32 %s11, 1
    %s19 = ssub.s32 %s11, %s18
    %p20 = scmp.eq.s32.totalorder %s19, 0
    %s22 = sadd.s32 %s21, 1
    %s23 = scalar_select %p20, %s21, %s22
    %p26 = pneg %p20
    %p27 = scmp.eq.s32.totalorder %s11, 1
    %p28 = por %p26, %p27
    %p29 = scmp.ne.s32.totalorder %s21, %s24
    %p30 = scmp.eq.s32.totalorder %s11, 0
    %p31 = por %p29, %p30
    %p32 = scmp.ne.s32.totalorder %s21, %s24
    %p33 = scmp.eq.s32.totalorder %s16, 1
    %p34 = por %p32, %p33
    %p35 = scmp.ne.s32.totalorder %s24, %s25
    %p36 = scmp.eq.s32.totalorder %s16, 0
    %p37 = por %p35, %p36
    %p38 = scmp.ne.s32.totalorder %s24, %s25
    %p39 = scmp.eq.s32.totalorder %s17, 1
    %p40 = por %p38, %p39
    %p42 = scmp.ne.s32.totalorder %s25, %s41
    %p43 = scmp.eq.s32.totalorder %s17, 0
    %p44 = por %p42, %p43
    %s46 = sadd.s32 %s45, 1
    %p49 = scmp.eq.s32.totalorder %s11, 1
    %p50 = scmp.ne.s32.totalorder %s45, %s47
    %p51 = scmp.eq.s32.totalorder %s11, 0
    %p52 = por %p50, %p51
    %p53 = scmp.ne.s32.totalorder %s45, %s47
    %p54 = scmp.eq.s32.totalorder %s16, 1
    %p55 = por %p53, %p54
    %p56 = scmp.ne.s32.totalorder %s47, %s48
    %p57 = scmp.eq.s32.totalorder %s16, 0
    %p58 = por %p56, %p57
    %p59 = scmp.ne.s32.totalorder %s47, %s48
    %p60 = scmp.eq.s32.totalorder %s17, 1
    %p61 = por %p59, %p60
    %p63 = scmp.ne.s32.totalorder %s48, %s62
    %p64 = scmp.eq.s32.totalorder %s17, 0
    %p65 = por %p63, %p64
    %s67 = sadd.s32 %s66, 1
    %p70 = scmp.eq.s32.totalorder %s11, 1
    %p71 = scmp.ne.s32.totalorder %s66, %s68
    %p72 = scmp.eq.s32.totalorder %s11, 0
    %p73 = por %p71, %p72
    %p74 = scmp.ne.s32.totalorder %s66, %s68
    %p75 = scmp.eq.s32.totalorder %s16, 1
    %p76 = por %p74, %p75
    %p77 = scmp.ne.s32.totalorder %s68, %s69
    %p78 = scmp.eq.s32.totalorder %s16, 0
    %p79 = por %p77, %p78
    %p80 = scmp.ne.s32.totalorder %s68, %s69
    %p81 = scmp.eq.s32.totalorder %s17, 1
    %p82 = por %p80, %p81
    %p84 = scmp.ne.s32.totalorder %s69, %s83
    %p85 = scmp.eq.s32.totalorder %s17, 0
    %p86 = por %p84, %p85
    %s88 = sadd.s32 %s87, 1
    %p91 = scmp.eq.s32.totalorder %s11, 1
    %p92 = scmp.ne.s32.totalorder %s87, %s89
    %p93 = scmp.eq.s32.totalorder %s11, 0
    %p94 = por %p92, %p93
    %p95 = scmp.ne.s32.totalorder %s87, %s89
    %p96 = scmp.eq.s32.totalorder %s16, 1
    %p97 = por %p95, %p96
    %p98 = scmp.ne.s32.totalorder %s89, %s90
    %p99 = scmp.eq.s32.totalorder %s16, 0
    %p100 = por %p98, %p99
    %p101 = scmp.ne.s32.totalorder %s89, %s90
    %p102 = scmp.eq.s32.totalorder %s17, 1
    %p103 = por %p101, %p102
    %p105 = scmp.ne.s32.totalorder %s90, %s104
    %p106 = scmp.eq.s32.totalorder %s17, 0
    %p107 = por %p105, %p106
    %s109 = sadd.s32 %s108, 1
    %p112 = scmp.eq.s32.totalorder %s11, 1
    %p113 = scmp.ne.s32.totalorder %s108, %s110
    %p114 = scmp.eq.s32.totalorder %s11, 0
    %p115 = por %p113, %p114
    %p116 = scmp.ne.s32.totalorder %s108, %s110
    %p117 = scmp.eq.s32.totalorder %s16, 1
    %p118 = por %p116, %p117
    %p119 = scmp.ne.s32.totalorder %s110, %s111
    %p120 = scmp.eq.s32.totalorder %s16, 0
    %p121 = por %p119, %p120
    %p122 = scmp.ne.s32.totalorder %s110, %s111
    %p123 = scmp.eq.s32.totalorder %s17, 1
    %p124 = por %p122, %p123
    %p126 = scmp.ne.s32.totalorder %s111, %s125
    %p127 = scmp.eq.s32.totalorder %s17, 0
    %p128 = por %p126, %p127
    %s129 = ssub.s32 %s11, %s18
    %p130 = scmp.eq.s32.totalorder %s129, 0
    %s132 = sadd.s32 %s131, 1
    %s133 = scalar_select %p130, %s131, %s132
    %p136 = pneg %p130
    %p137 = scmp.eq.s32.totalorder %s11, 1
    %p138 = por %p136, %p137
    %p139 = scmp.ne.s32.totalorder %s131, %s134
    %p140 = scmp.eq.s32.totalorder %s11, 0
    %p141 = por %p139, %p140
    %p142 = scmp.ne.s32.totalorder %s131, %s134
    %p143 = scmp.eq.s32.totalorder %s16, 1
    %p144 = por %p142, %p143
    %p145 = scmp.ne.s32.totalorder %s134, %s135
    %p146 = scmp.eq.s32.totalorder %s16, 0
    %p147 = por %p145, %p146
    %p148 = scmp.ne.s32.totalorder %s134, %s135
    %p149 = scmp.eq.s32.totalorder %s17, 1
    %p150 = por %p148, %p149
    %p152 = scmp.ne.s32.totalorder %s135, %s151
    %p153 = scmp.eq.s32.totalorder %s17, 0
    %p154 = por %p152, %p153
    %p155 = scmp.le.s32.totalorder 1, %s11
    %p156 = scmp.lt.s32.totalorder %s11, 3
    %p157 = pnand %p155, %p156
    %p158 = pneg %p157
    // Predicated region
    $region9: #{tpu_custom_call.1} parent=5 // pred_check
      _
    $region10: #{tpu_custom_call.1} parent=5 // pred_check_branch
      %160 = sbr.rel (%p157) target = $region12
    $region11: #{tpu_custom_call.1} parent=5 // pred_region
      %s161 = ssub.s32 %s11, 1
      // Predicated region
      $region13: #{tpu_custom_call.1} parent=11 // pred_check
        %p162 = pneg %p58
      $region14: #{tpu_custom_call.1} parent=11 // pred_check_branch
        %164 = sbr.rel (%p162) target = $region16
      $region15: #{tpu_custom_call.1} parent=11 // pred_region
        _
      $region16: #{tpu_custom_call.1} parent=11 // pred_fallthru
        _
      // Predicated region
      $region17: #{tpu_custom_call.1} parent=11 // pred_check
        %p165 = pneg %p79
      $region18: #{tpu_custom_call.1} parent=11 // pred_check_branch
        %167 = sbr.rel (%p165) target = $region20
      $region19: #{tpu_custom_call.1} parent=11 // pred_region
        _
      $region20: #{tpu_custom_call.1} parent=11 // pred_fallthru
        _
      // Predicated region
      $region21: #{tpu_custom_call.1} parent=11 // pred_check
        %p168 = pneg %p100
      $region22: #{tpu_custom_call.1} parent=11 // pred_check_branch
        %170 = sbr.rel (%p168) target = $region24
      $region23: #{tpu_custom_call.1} parent=11 // pred_region
        _
      $region24: #{tpu_custom_call.1} parent=11 // pred_fallthru
        _
      // Predicated region
      $region25: #{tpu_custom_call.1} parent=11 // pred_check
        %p171 = pneg %p121
      $region26: #{tpu_custom_call.1} parent=11 // pred_check_branch
        %173 = sbr.rel (%p171) target = $region28
      $region27: #{tpu_custom_call.1} parent=11 // pred_region
        _
      $region28: #{tpu_custom_call.1} parent=11 // pred_fallthru
        _
    $region12: #{tpu_custom_call.1} parent=5 // pred_fallthru
      _
    %p174 = scmp.lt.s32.totalorder %s11, 2
    // Predicated region
    $region29: #{tpu_custom_call.1} parent=5 // pred_check
      %p175 = pneg %p174
    $region30: #{tpu_custom_call.1} parent=5 // pred_check_branch
      %177 = sbr.rel (%p175) target = $region32
    $region31: #{tpu_custom_call.1} parent=5 // pred_region
      // Predicated region
      $region33: #{tpu_custom_call.1} parent=31 // pred_check
        %p178 = pneg %p31
      $region34: #{tpu_custom_call.1} parent=31 // pred_check_branch
        %180 = sbr.rel (%p178) target = $region36
      $region35: #{tpu_custom_call.1} parent=31 // pred_region
        %s181 = smul.u32 16, %s11
        %p182 = scmp.lt.s32.totalorder %s181, 31
        %s183 = scalar_select %p182, %s181, 31
        %s184 = smul.addr %s183, 7
        %s185 = smul.addr %s184, 4
        %s186 = scalar_lea.vmem %s0, %s185
        %s187 = smul.u32 16, %s11
      $region36: #{tpu_custom_call.1} parent=31 // pred_fallthru
        _
    $region32: #{tpu_custom_call.1} parent=5 // pred_fallthru
      _
    %p188 = scmp.le.s32.totalorder 1, %s11
    %p189 = scmp.lt.s32.totalorder %s11, 3
    %p190 = pnand %p188, %p189
    %p191 = pneg %p190
    // Predicated region
    $region37: #{tpu_custom_call.1} parent=5 // pred_check
      _
    $region38: #{tpu_custom_call.1} parent=5 // pred_check_branch
      %193 = sbr.rel (%p190) target = $region40
    $region39: #{tpu_custom_call.1} parent=5 // pred_region
      %s194 = ssub.s32 %s11, 1
      %s195 = smul.u32 16, %s16
      %p196 = scmp.lt.s32.totalorder %s195, 31
      %s197 = scalar_select %p196, %s195, 31
      %s198 = smul.addr %s197, 7
      %s199 = smul.addr %s198, 4
      %s200 = scalar_lea.vmem %s0, %s199
      %p201 = pneg %p37
      %p202 = pneg %p34
      %p203 = pneg %p58
      %p204 = pneg %p55
      %p205 = pneg %p79
      %p206 = pneg %p76
      %p207 = pneg %p100
      %p208 = pneg %p97
      %p209 = pneg %p121
      %p210 = pneg %p118
      %p211 = pneg %p147
      %p212 = pneg %p144
      %s213 = smul.u32 16, %s16
      %p214 = scmp.lt.s32.totalorder %s213, 31
      %s215 = scalar_select %p214, %s213, 31
      %s216 = smul.addr %s215, 2
      %s217 = smul.addr %s216, 4
      %s218 = scalar_lea.vmem %s5, %s217
      %s219 = smul.u32 16, %s16
      %p220 = scmp.lt.s32.totalorder %s219, 31
      %s221 = scalar_select %p220, %s219, 31
      %s222 = smul.addr %s221, 7
      %s223 = smul.addr %s222, 4
      %s224 = scalar_lea.vmem %s0, %s223
      %s225 = smul.u32 16, %s16
      %s226 = smul.u32 16, %s16
      %p227 = scmp.lt.s32.totalorder %s226, 31
      %s228 = scalar_select %p227, %s226, 31
      %s229 = smul.addr %s228, 2
      %s230 = smul.addr %s229, 4
      %s231 = scalar_lea.vmem %s5, %s230
      %s232 = smul.u32 16, %s16
      %v234 = vld [vmem:[%s224] sm:$0xff]
      %v235 = vld [vmem:[%s224 + $0x8] sm:$0xff]
      %v236 = vld [vmem:[%s224 + $0x10] sm:$0xff]
      %v237 = vld [vmem:[%s224 + $0x18] sm:$0xf]
      %v238 = vld [vmem:[%s224 + $0x1c] sm:$0xff]
      %v239 = vld [vmem:[%s224 + $0x24] sm:$0xff]
      %v240 = vld [vmem:[%s224 + $0x2c] sm:$0xff]
      %v241 = vld [vmem:[%s224 + $0x34] sm:$0xf]
      %v242 = vld [vmem:[%s224 + $0x38] sm:$0xff]
      %v243 = vld [vmem:[%s224 + $0x40] sm:$0xff]
      %v244 = vld [vmem:[%s224 + $0x48] sm:$0xff]
      %v245 = vld [vmem:[%s224 + $0x50] sm:$0xf]
      %v246 = vld [vmem:[%s224 + $0x54] sm:$0xff]
      %v247 = vld [vmem:[%s224 + $0x5c] sm:$0xff]
      %v248 = vld [vmem:[%s224 + $0x64] sm:$0xff]
      %v249 = vld [vmem:[%s224 + $0x6c] sm:$0xf]
      %v250 = vld [vmem:[%s224 + $0x70] sm:$0xff]
      %v251 = vld [vmem:[%s224 + $0x78] sm:$0xff]
      %v252 = vld [vmem:[%s224 + $0x80] sm:$0xff]
      %v253 = vld [vmem:[%s224 + $0x88] sm:$0xf]
      %v254 = vld [vmem:[%s224 + $0x8c] sm:$0xff]
      %v255 = vld [vmem:[%s224 + $0x94] sm:$0xff]
      %v256 = vld [vmem:[%s224 + $0x9c] sm:$0xff]
      %v257 = vld [vmem:[%s224 + $0xa4] sm:$0xf]
      %v258 = vld [vmem:[%s224 + $0xa8] sm:$0xff]
      %v259 = vld [vmem:[%s224 + $0xb0] sm:$0xff]
      %v260 = vld [vmem:[%s224 + $0xb8] sm:$0xff]
      %v261 = vld [vmem:[%s224 + $0xc0] sm:$0xf]
      %v262 = vld [vmem:[%s224 + $0xc4] sm:$0xff]
      %v263 = vld [vmem:[%s224 + $0xcc] sm:$0xff]
      %v264 = vld [vmem:[%s224 + $0xd4] sm:$0xff]
      %v265 = vld [vmem:[%s224 + $0xdc] sm:$0xf]
      %v266 = vld [vmem:[%s224 + $0xe0] sm:$0xff]
      %v267 = vld [vmem:[%s224 + $0xe8] sm:$0xff]
      %v268 = vld [vmem:[%s224 + $0xf0] sm:$0xff]
      %v269 = vld [vmem:[%s224 + $0xf8] sm:$0xf]
      %v270 = vld [vmem:[%s224 + $0xfc] sm:$0xff]
      %v271 = vld [vmem:[%s224 + $0x104] sm:$0xff]
      %v272 = vld [vmem:[%s224 + $0x10c] sm:$0xff]
      %v273 = vld [vmem:[%s224 + $0x114] sm:$0xf]
      %v274 = vld [vmem:[%s224 + $0x118] sm:$0xff]
      %v275 = vld [vmem:[%s224 + $0x120] sm:$0xff]
      %v276 = vld [vmem:[%s224 + $0x128] sm:$0xff]
      %v277 = vld [vmem:[%s224 + $0x130] sm:$0xf]
      %v278 = vld [vmem:[%s224 + $0x134] sm:$0xff]
      %v279 = vld [vmem:[%s224 + $0x13c] sm:$0xff]
      %v280 = vld [vmem:[%s224 + $0x144] sm:$0xff]
      %v281 = vld [vmem:[%s224 + $0x14c] sm:$0xf]
      %v282 = vld [vmem:[%s224 + $0x150] sm:$0xff]
      %v283 = vld [vmem:[%s224 + $0x158] sm:$0xff]
      %v284 = vld [vmem:[%s224 + $0x160] sm:$0xff]
      %v285 = vld [vmem:[%s224 + $0x168] sm:$0xf]
      %v286 = vld [vmem:[%s224 + $0x16c] sm:$0xff]
      %v287 = vld [vmem:[%s224 + $0x174] sm:$0xff]
      %v288 = vld [vmem:[%s224 + $0x17c] sm:$0xff]
      %v289 = vld [vmem:[%s224 + $0x184] sm:$0xf]
      %v290 = vld [vmem:[%s224 + $0x188] sm:$0xff]
      %v291 = vld [vmem:[%s224 + $0x190] sm:$0xff]
      %v292 = vld [vmem:[%s224 + $0x198] sm:$0xff]
      %v293 = vld [vmem:[%s224 + $0x1a0] sm:$0xf]
      %v294 = vld [vmem:[%s224 + $0x1a4] sm:$0xff]
      %v295 = vld [vmem:[%s224 + $0x1ac] sm:$0xff]
      %v296 = vld [vmem:[%s224 + $0x1b4] sm:$0xff]
      %v297 = vld [vmem:[%s224 + $0x1bc] sm:$0xf]
      %v298 = vld [vmem:[%s1] sm:$0xff]
      %v299 = vld [vmem:[%s1 + $0x8] sm:$0xff]
      %v300 = vld [vmem:[%s1 + $0x10] sm:$0xff]
      %v301 = vld [vmem:[%s1 + $0x18] sm:$0xff]
      %v302 = vld [vmem:[%s1 + $0x20] sm:$0xff]
      %v303 = vld [vmem:[%s1 + $0x28] sm:$0xff]
      %v304 = vld [vmem:[%s1 + $0x30] sm:$0xff]
      %v305 = vld [vmem:[%s1 + $0x38] sm:$0xff]
      %v306 = vld [vmem:[%s1 + $0x40] sm:$0xff]
      %v307 = vld [vmem:[%s1 + $0x48] sm:$0xff]
      %v308 = vld [vmem:[%s1 + $0x50] sm:$0xff]
      %v309 = vld [vmem:[%s1 + $0x58] sm:$0xff]
      %v310 = vld [vmem:[%s1 + $0x60] sm:$0xff]
      %v311 = vld [vmem:[%s1 + $0x68] sm:$0xff]
      %v312 = vld [vmem:[%s1 + $0x70] sm:$0xff]
      %v313 = vld [vmem:[%s1 + $0x78] sm:$0xff]
      %v314 = vld [vmem:[%s1 + $0x80] sm:$0xff]
      %v315 = vld [vmem:[%s1 + $0x88] sm:$0xff]
      %v316 = vld [vmem:[%s1 + $0x90] sm:$0xff]
      %v317 = vld [vmem:[%s1 + $0x98] sm:$0xff]
      %v318 = vld [vmem:[%s1 + $0xa0] sm:$0xff]
      %v319 = vld [vmem:[%s1 + $0xa8] sm:$0xff]
      %v320 = vld [vmem:[%s1 + $0xb0] sm:$0xff]
      %v321 = vld [vmem:[%s1 + $0xb8] sm:$0xff]
      %v322 = vld [vmem:[%s1 + $0xc0] sm:$0xff]
      %v323 = vld [vmem:[%s1 + $0xc8] sm:$0xff]
      %v324 = vld [vmem:[%s1 + $0xd0] sm:$0xff]
      %v325 = vld [vmem:[%s1 + $0xd8] sm:$0xff]
      %v326 = vld [vmem:[%s1 + $0xe0] sm:$0xff]
      %v327 = vld [vmem:[%s1 + $0xe8] sm:$0xff]
      %v328 = vld [vmem:[%s1 + $0xf0] sm:$0xff]
      %v329 = vld [vmem:[%s1 + $0xf8] sm:$0xff]
      %v330 = vld [vmem:[%s1 + $0x100] sm:$0xff]
      %v331 = vld [vmem:[%s1 + $0x108] sm:$0xff]
      %v332 = vld [vmem:[%s1 + $0x110] sm:$0xff]
      %v333 = vld [vmem:[%s1 + $0x118] sm:$0xff]
      %v334 = vld [vmem:[%s1 + $0x120] sm:$0xff]
      %v335 = vld [vmem:[%s1 + $0x128] sm:$0xff]
      %v336 = vld [vmem:[%s1 + $0x130] sm:$0xff]
      %v337 = vld [vmem:[%s1 + $0x138] sm:$0xff]
      %v338 = vld [vmem:[%s1 + $0x140] sm:$0xff]
      %v339 = vld [vmem:[%s1 + $0x148] sm:$0xff]
      %v340 = vld [vmem:[%s1 + $0x150] sm:$0xff]
      %v341 = vld [vmem:[%s1 + $0x158] sm:$0xff]
      %v342 = vld [vmem:[%s1 + $0x160] sm:$0xff]
      %v343 = vld [vmem:[%s1 + $0x168] sm:$0xff]
      %v344 = vld [vmem:[%s1 + $0x170] sm:$0xff]
      %v345 = vld [vmem:[%s1 + $0x178] sm:$0xff]
      %v346 = vld [vmem:[%s1 + $0x180] sm:$0xff]
      %v347 = vld [vmem:[%s1 + $0x188] sm:$0xff]
      %v348 = vld [vmem:[%s1 + $0x190] sm:$0xff]
      %v349 = vld [vmem:[%s1 + $0x198] sm:$0xff]
      %v350 = vld [vmem:[%s1 + $0x1a0] sm:$0xff]
      %v351 = vld [vmem:[%s1 + $0x1a8] sm:$0xff]
      %v352 = vld [vmem:[%s1 + $0x1b0] sm:$0xff]
      %v353 = vld [vmem:[%s1 + $0x1b8] sm:$0xff]
      %v354 = vld [vmem:[%s1 + $0x1c0] sm:$0xff]
      %v355 = vld [vmem:[%s1 + $0x1c8] sm:$0xff]
      %v356 = vld [vmem:[%s1 + $0x1d0] sm:$0xff]
      %v357 = vld [vmem:[%s1 + $0x1d8] sm:$0xff]
      %v358 = vld [vmem:[%s1 + $0x1e0] sm:$0xff]
      %v359 = vld [vmem:[%s1 + $0x1e8] sm:$0xff]
      %v360 = vld [vmem:[%s1 + $0x1f0] sm:$0xff]
      %v361 = vld [vmem:[%s1 + $0x1f8] sm:$0xff]
      %v362 = vld [vmem:[%s1 + $0x200] sm:$0xff]
      %v363 = vld [vmem:[%s1 + $0x208] sm:$0xff]
      %v364 = vld [vmem:[%s1 + $0x210] sm:$0xff]
      %v365 = vld [vmem:[%s1 + $0x218] sm:$0xff]
      %v366 = vld [vmem:[%s1 + $0x220] sm:$0xff]
      %v367 = vld [vmem:[%s1 + $0x228] sm:$0xff]
      %v368 = vld [vmem:[%s1 + $0x230] sm:$0xff]
      %v369 = vld [vmem:[%s1 + $0x238] sm:$0xff]
      %v370 = vld [vmem:[%s1 + $0x240] sm:$0xff]
      %v371 = vld [vmem:[%s1 + $0x248] sm:$0xff]
      %v372 = vld [vmem:[%s1 + $0x250] sm:$0xff]
      %v373 = vld [vmem:[%s1 + $0x258] sm:$0xff]
      %v374 = vld [vmem:[%s1 + $0x260] sm:$0xff]
      %v375 = vld [vmem:[%s1 + $0x268] sm:$0xff]
      %v376 = vld [vmem:[%s1 + $0x270] sm:$0xff]
      %v377 = vld [vmem:[%s1 + $0x278] sm:$0xff]
      %v378 = vld [vmem:[%s1 + $0x280] sm:$0xff]
      %v379 = vld [vmem:[%s1 + $0x288] sm:$0xff]
      %v380 = vld [vmem:[%s1 + $0x290] sm:$0xff]
      %v381 = vld [vmem:[%s1 + $0x298] sm:$0xff]
      %v382 = vld [vmem:[%s1 + $0x2a0] sm:$0xff]
      %v383 = vld [vmem:[%s1 + $0x2a8] sm:$0xff]
      %v384 = vld [vmem:[%s1 + $0x2b0] sm:$0xff]
      %v385 = vld [vmem:[%s1 + $0x2b8] sm:$0xff]
      %v386 = vld [vmem:[%s1 + $0x2c0] sm:$0xff]
      %v387 = vld [vmem:[%s1 + $0x2c8] sm:$0xff]
      %v388 = vld [vmem:[%s1 + $0x2d0] sm:$0xff]
      %v389 = vld [vmem:[%s1 + $0x2d8] sm:$0xff]
      %v390 = vld [vmem:[%s1 + $0x2e0] sm:$0xff]
      %v391 = vld [vmem:[%s1 + $0x2e8] sm:$0xff]
      %v392 = vld [vmem:[%s1 + $0x2f0] sm:$0xff]
      %v393 = vld [vmem:[%s1 + $0x2f8] sm:$0xff]
      %v394 = vld [vmem:[%s1 + $0x300] sm:$0xff]
      %v395 = vld [vmem:[%s1 + $0x308] sm:$0xff]
      %v396 = vld [vmem:[%s1 + $0x310] sm:$0xff]
      %v397 = vld [vmem:[%s1 + $0x318] sm:$0xff]
      %v398 = vld [vmem:[%s1 + $0x320] sm:$0xff]
      %v399 = vld [vmem:[%s1 + $0x328] sm:$0xff]
      %v400 = vld [vmem:[%s1 + $0x330] sm:$0xff]
      %v401 = vld [vmem:[%s1 + $0x338] sm:$0xff]
      %v402 = vld [vmem:[%s1 + $0x340] sm:$0xff]
      %v403 = vld [vmem:[%s1 + $0x348] sm:$0xff]
      %v404 = vld [vmem:[%s1 + $0x350] sm:$0xff]
      %v405 = vld [vmem:[%s1 + $0x358] sm:$0xff]
      %v406 = vld [vmem:[%s1 + $0x360] sm:$0xff]
      %v407 = vld [vmem:[%s1 + $0x368] sm:$0xff]
      %v408 = vld [vmem:[%s1 + $0x370] sm:$0xff]
      %v409 = vld [vmem:[%s1 + $0x378] sm:$0xff]
      %v410 = vld [vmem:[%s2] sm:$0x3]
      %v412 = vperm.slane %v410, 0
      %v413 = vperm.slane %v410, 1
      %v480 = vunpack.c.l.b16 %v234
      %v481 = vunpack.c.h.b16 %v234
      %v482 = vunpack.c.l.b16 %v235
      %v483 = vunpack.c.h.b16 %v235
      %v484 = vunpack.c.l.b16 %v236
      %v485 = vunpack.c.h.b16 %v236
      %v486 = vunpack.c.l.b16 %v237
      %v487 = vunpack.c.l.b16 %v238
      %v488 = vunpack.c.h.b16 %v238
      %v489 = vunpack.c.l.b16 %v239
      %v490 = vunpack.c.h.b16 %v239
      %v491 = vunpack.c.l.b16 %v240
      %v492 = vunpack.c.h.b16 %v240
      %v493 = vunpack.c.l.b16 %v241
      %v494 = vunpack.c.l.b16 %v242
      %v495 = vunpack.c.h.b16 %v242
      %v496 = vunpack.c.l.b16 %v243
      %v497 = vunpack.c.h.b16 %v243
      %v498 = vunpack.c.l.b16 %v244
      %v499 = vunpack.c.h.b16 %v244
      %v500 = vunpack.c.l.b16 %v245
      %v501 = vunpack.c.l.b16 %v246
      %v502 = vunpack.c.h.b16 %v246
      %v503 = vunpack.c.l.b16 %v247
      %v504 = vunpack.c.h.b16 %v247
      %v505 = vunpack.c.l.b16 %v248
      %v506 = vunpack.c.h.b16 %v248
      %v507 = vunpack.c.l.b16 %v249
      %v508 = vunpack.c.l.b16 %v250
      %v509 = vunpack.c.h.b16 %v250
      %v510 = vunpack.c.l.b16 %v251
      %v511 = vunpack.c.h.b16 %v251
      %v512 = vunpack.c.l.b16 %v252
      %v513 = vunpack.c.h.b16 %v252
      %v514 = vunpack.c.l.b16 %v253
      %v515 = vunpack.c.l.b16 %v254
      %v516 = vunpack.c.h.b16 %v254
      %v517 = vunpack.c.l.b16 %v255
      %v518 = vunpack.c.h.b16 %v255
      %v519 = vunpack.c.l.b16 %v256
      %v520 = vunpack.c.h.b16 %v256
      %v521 = vunpack.c.l.b16 %v257
      %v522 = vunpack.c.l.b16 %v258
      %v523 = vunpack.c.h.b16 %v258
      %v524 = vunpack.c.l.b16 %v259
      %v525 = vunpack.c.h.b16 %v259
      %v526 = vunpack.c.l.b16 %v260
      %v527 = vunpack.c.h.b16 %v260
      %v528 = vunpack.c.l.b16 %v261
      %v529 = vunpack.c.l.b16 %v262
      %v530 = vunpack.c.h.b16 %v262
      %v531 = vunpack.c.l.b16 %v263
      %v532 = vunpack.c.h.b16 %v263
      %v533 = vunpack.c.l.b16 %v264
      %v534 = vunpack.c.h.b16 %v264
      %v535 = vunpack.c.l.b16 %v265
      %v536 = vunpack.c.l.b16 %v266
      %v537 = vunpack.c.h.b16 %v266
      %v538 = vunpack.c.l.b16 %v267
      %v539 = vunpack.c.h.b16 %v267
      %v540 = vunpack.c.l.b16 %v268
      %v541 = vunpack.c.h.b16 %v268
      %v542 = vunpack.c.l.b16 %v269
      %v543 = vunpack.c.l.b16 %v270
      %v544 = vunpack.c.h.b16 %v270
      %v545 = vunpack.c.l.b16 %v271
      %v546 = vunpack.c.h.b16 %v271
      %v547 = vunpack.c.l.b16 %v272
      %v548 = vunpack.c.h.b16 %v272
      %v549 = vunpack.c.l.b16 %v273
      %v550 = vunpack.c.l.b16 %v274
      %v551 = vunpack.c.h.b16 %v274
      %v552 = vunpack.c.l.b16 %v275
      %v553 = vunpack.c.h.b16 %v275
      %v554 = vunpack.c.l.b16 %v276
      %v555 = vunpack.c.h.b16 %v276
      %v556 = vunpack.c.l.b16 %v277
      %v557 = vunpack.c.l.b16 %v278
      %v558 = vunpack.c.h.b16 %v278
      %v559 = vunpack.c.l.b16 %v279
      %v560 = vunpack.c.h.b16 %v279
      %v561 = vunpack.c.l.b16 %v280
      %v562 = vunpack.c.h.b16 %v280
      %v563 = vunpack.c.l.b16 %v281
      %v564 = vunpack.c.l.b16 %v282
      %v565 = vunpack.c.h.b16 %v282
      %v566 = vunpack.c.l.b16 %v283
      %v567 = vunpack.c.h.b16 %v283
      %v568 = vunpack.c.l.b16 %v284
      %v569 = vunpack.c.h.b16 %v284
      %v570 = vunpack.c.l.b16 %v285
      %v571 = vunpack.c.l.b16 %v286
      %v572 = vunpack.c.h.b16 %v286
      %v573 = vunpack.c.l.b16 %v287
      %v574 = vunpack.c.h.b16 %v287
      %v575 = vunpack.c.l.b16 %v288
      %v576 = vunpack.c.h.b16 %v288
      %v577 = vunpack.c.l.b16 %v289
      %v578 = vunpack.c.l.b16 %v290
      %v579 = vunpack.c.h.b16 %v290
      %v580 = vunpack.c.l.b16 %v291
      %v581 = vunpack.c.h.b16 %v291
      %v582 = vunpack.c.l.b16 %v292
      %v583 = vunpack.c.h.b16 %v292
      %v584 = vunpack.c.l.b16 %v293
      %v585 = vunpack.c.l.b16 %v294
      %v586 = vunpack.c.h.b16 %v294
      %v587 = vunpack.c.l.b16 %v295
      %v588 = vunpack.c.h.b16 %v295
      %v589 = vunpack.c.l.b16 %v296
      %v590 = vunpack.c.h.b16 %v296
      %v591 = vunpack.c.l.b16 %v297
      %v592 = vpack.c.b16 %v487, %v480
      %v593 = vpack.c.b16 %v488, %v481
      %v594 = vpack.c.b16 %v489, %v482
      %v595 = vpack.c.b16 %v490, %v483
      %v596 = vpack.c.b16 %v491, %v484
      %v597 = vpack.c.b16 %v492, %v485
      %v598 = vpack.c.b16 %v493, %v486
      %v599 = vpack.c.b16 %v501, %v494
      %v600 = vpack.c.b16 %v502, %v495
      %v601 = vpack.c.b16 %v503, %v496
      %v602 = vpack.c.b16 %v504, %v497
      %v603 = vpack.c.b16 %v505, %v498
      %v604 = vpack.c.b16 %v506, %v499
      %v605 = vpack.c.b16 %v507, %v500
      %v606 = vpack.c.b16 %v515, %v508
      %v607 = vpack.c.b16 %v516, %v509
      %v608 = vpack.c.b16 %v517, %v510
      %v609 = vpack.c.b16 %v518, %v511
      %v610 = vpack.c.b16 %v519, %v512
      %v611 = vpack.c.b16 %v520, %v513
      %v612 = vpack.c.b16 %v521, %v514
      %v613 = vpack.c.b16 %v529, %v522
      %v614 = vpack.c.b16 %v530, %v523
      %v615 = vpack.c.b16 %v531, %v524
      %v616 = vpack.c.b16 %v532, %v525
      %v617 = vpack.c.b16 %v533, %v526
      %v618 = vpack.c.b16 %v534, %v527
      %v619 = vpack.c.b16 %v535, %v528
      %v620 = vpack.c.b16 %v543, %v536
      %v621 = vpack.c.b16 %v544, %v537
      %v622 = vpack.c.b16 %v545, %v538
      %v623 = vpack.c.b16 %v546, %v539
      %v624 = vpack.c.b16 %v547, %v540
      %v625 = vpack.c.b16 %v548, %v541
      %v626 = vpack.c.b16 %v549, %v542
      %v627 = vpack.c.b16 %v557, %v550
      %v628 = vpack.c.b16 %v558, %v551
      %v629 = vpack.c.b16 %v559, %v552
      %v630 = vpack.c.b16 %v560, %v553
      %v631 = vpack.c.b16 %v561, %v554
      %v632 = vpack.c.b16 %v562, %v555
      %v633 = vpack.c.b16 %v563, %v556
      %v634 = vpack.c.b16 %v571, %v564
      %v635 = vpack.c.b16 %v572, %v565
      %v636 = vpack.c.b16 %v573, %v566
      %v637 = vpack.c.b16 %v574, %v567
      %v638 = vpack.c.b16 %v575, %v568
      %v639 = vpack.c.b16 %v576, %v569
      %v640 = vpack.c.b16 %v577, %v570
      %v641 = vpack.c.b16 %v585, %v578
      %v642 = vpack.c.b16 %v586, %v579
      %v643 = vpack.c.b16 %v587, %v580
      %v644 = vpack.c.b16 %v588, %v581
      %v645 = vpack.c.b16 %v589, %v582
      %v646 = vpack.c.b16 %v590, %v583
      %v647 = vpack.c.b16 %v591, %v584
      %v816 = vunpack.c.l.b16 %v298
      %v817 = vunpack.c.h.b16 %v298
      %v818 = vunpack.c.l.b16 %v299
      %v819 = vunpack.c.h.b16 %v299
      %v820 = vunpack.c.l.b16 %v300
      %v821 = vunpack.c.h.b16 %v300
      %v822 = vunpack.c.l.b16 %v301
      %v823 = vunpack.c.h.b16 %v301
      %v824 = vunpack.c.l.b16 %v302
      %v825 = vunpack.c.h.b16 %v302
      %v826 = vunpack.c.l.b16 %v303
      %v827 = vunpack.c.h.b16 %v303
      %v828 = vunpack.c.l.b16 %v304
      %v829 = vunpack.c.h.b16 %v304
      %v830 = vunpack.c.l.b16 %v305
      %v831 = vunpack.c.h.b16 %v305
      %v832 = vunpack.c.l.b16 %v306
      %v833 = vunpack.c.h.b16 %v306
      %v834 = vunpack.c.l.b16 %v307
      %v835 = vunpack.c.h.b16 %v307
      %v836 = vunpack.c.l.b16 %v308
      %v837 = vunpack.c.h.b16 %v308
      %v838 = vunpack.c.l.b16 %v309
      %v839 = vunpack.c.h.b16 %v309
      %v840 = vunpack.c.l.b16 %v310
      %v841 = vunpack.c.h.b16 %v310
      %v842 = vunpack.c.l.b16 %v311
      %v843 = vunpack.c.h.b16 %v311
      %v844 = vunpack.c.l.b16 %v312
      %v845 = vunpack.c.h.b16 %v312
      %v846 = vunpack.c.l.b16 %v313
      %v847 = vunpack.c.h.b16 %v313
      %v848 = vunpack.c.l.b16 %v314
      %v849 = vunpack.c.h.b16 %v314
      %v850 = vunpack.c.l.b16 %v315
      %v851 = vunpack.c.h.b16 %v315
      %v852 = vunpack.c.l.b16 %v316
      %v853 = vunpack.c.h.b16 %v316
      %v854 = vunpack.c.l.b16 %v317
      %v855 = vunpack.c.h.b16 %v317
      %v856 = vunpack.c.l.b16 %v318
      %v857 = vunpack.c.h.b16 %v318
      %v858 = vunpack.c.l.b16 %v319
      %v859 = vunpack.c.h.b16 %v319
      %v860 = vunpack.c.l.b16 %v320
      %v861 = vunpack.c.h.b16 %v320
      %v862 = vunpack.c.l.b16 %v321
      %v863 = vunpack.c.h.b16 %v321
      %v864 = vunpack.c.l.b16 %v322
      %v865 = vunpack.c.h.b16 %v322
      %v866 = vunpack.c.l.b16 %v323
      %v867 = vunpack.c.h.b16 %v323
      %v868 = vunpack.c.l.b16 %v324
      %v869 = vunpack.c.h.b16 %v324
      %v870 = vunpack.c.l.b16 %v325
      %v871 = vunpack.c.h.b16 %v325
      %v872 = vunpack.c.l.b16 %v326
      %v873 = vunpack.c.h.b16 %v326
      %v874 = vunpack.c.l.b16 %v327
      %v875 = vunpack.c.h.b16 %v327
      %v876 = vunpack.c.l.b16 %v328
      %v877 = vunpack.c.h.b16 %v328
      %v878 = vunpack.c.l.b16 %v329
      %v879 = vunpack.c.h.b16 %v329
      %v880 = vunpack.c.l.b16 %v330
      %v881 = vunpack.c.h.b16 %v330
      %v882 = vunpack.c.l.b16 %v331
      %v883 = vunpack.c.h.b16 %v331
      %v884 = vunpack.c.l.b16 %v332
      %v885 = vunpack.c.h.b16 %v332
      %v886 = vunpack.c.l.b16 %v333
      %v887 = vunpack.c.h.b16 %v333
      %v888 = vunpack.c.l.b16 %v334
      %v889 = vunpack.c.h.b16 %v334
      %v890 = vunpack.c.l.b16 %v335
      %v891 = vunpack.c.h.b16 %v335
      %v892 = vunpack.c.l.b16 %v336
      %v893 = vunpack.c.h.b16 %v336
      %v894 = vunpack.c.l.b16 %v337
      %v895 = vunpack.c.h.b16 %v337
      %v896 = vunpack.c.l.b16 %v338
      %v897 = vunpack.c.h.b16 %v338
      %v898 = vunpack.c.l.b16 %v339
      %v899 = vunpack.c.h.b16 %v339
      %v900 = vunpack.c.l.b16 %v340
      %v901 = vunpack.c.h.b16 %v340
      %v902 = vunpack.c.l.b16 %v341
      %v903 = vunpack.c.h.b16 %v341
      %v904 = vunpack.c.l.b16 %v342
      %v905 = vunpack.c.h.b16 %v342
      %v906 = vunpack.c.l.b16 %v343
      %v907 = vunpack.c.h.b16 %v343
      %v908 = vunpack.c.l.b16 %v344
      %v909 = vunpack.c.h.b16 %v344
      %v910 = vunpack.c.l.b16 %v345
      %v911 = vunpack.c.h.b16 %v345
      %v912 = vunpack.c.l.b16 %v346
      %v913 = vunpack.c.h.b16 %v346
      %v914 = vunpack.c.l.b16 %v347
      %v915 = vunpack.c.h.b16 %v347
      %v916 = vunpack.c.l.b16 %v348
      %v917 = vunpack.c.h.b16 %v348
      %v918 = vunpack.c.l.b16 %v349
      %v919 = vunpack.c.h.b16 %v349
      %v920 = vunpack.c.l.b16 %v350
      %v921 = vunpack.c.h.b16 %v350
      %v922 = vunpack.c.l.b16 %v351
      %v923 = vunpack.c.h.b16 %v351
      %v924 = vunpack.c.l.b16 %v352
      %v925 = vunpack.c.h.b16 %v352
      %v926 = vunpack.c.l.b16 %v353
      %v927 = vunpack.c.h.b16 %v353
      %v928 = vunpack.c.l.b16 %v354
      %v929 = vunpack.c.h.b16 %v354
      %v930 = vunpack.c.l.b16 %v355
      %v931 = vunpack.c.h.b16 %v355
      %v932 = vunpack.c.l.b16 %v356
      %v933 = vunpack.c.h.b16 %v356
      %v934 = vunpack.c.l.b16 %v357
      %v935 = vunpack.c.h.b16 %v357
      %v936 = vunpack.c.l.b16 %v358
      %v937 = vunpack.c.h.b16 %v358
      %v938 = vunpack.c.l.b16 %v359
      %v939 = vunpack.c.h.b16 %v359
      %v940 = vunpack.c.l.b16 %v360
      %v941 = vunpack.c.h.b16 %v360
      %v942 = vunpack.c.l.b16 %v361
      %v943 = vunpack.c.h.b16 %v361
      %v944 = vunpack.c.l.b16 %v362
      %v945 = vunpack.c.h.b16 %v362
      %v946 = vunpack.c.l.b16 %v363
      %v947 = vunpack.c.h.b16 %v363
      %v948 = vunpack.c.l.b16 %v364
      %v949 = vunpack.c.h.b16 %v364
      %v950 = vunpack.c.l.b16 %v365
      %v951 = vunpack.c.h.b16 %v365
      %v952 = vunpack.c.l.b16 %v366
      %v953 = vunpack.c.h.b16 %v366
      %v954 = vunpack.c.l.b16 %v367
      %v955 = vunpack.c.h.b16 %v367
      %v956 = vunpack.c.l.b16 %v368
      %v957 = vunpack.c.h.b16 %v368
      %v958 = vunpack.c.l.b16 %v369
      %v959 = vunpack.c.h.b16 %v369
      %v960 = vunpack.c.l.b16 %v370
      %v961 = vunpack.c.h.b16 %v370
      %v962 = vunpack.c.l.b16 %v371
      %v963 = vunpack.c.h.b16 %v371
      %v964 = vunpack.c.l.b16 %v372
      %v965 = vunpack.c.h.b16 %v372
      %v966 = vunpack.c.l.b16 %v373
      %v967 = vunpack.c.h.b16 %v373
      %v968 = vunpack.c.l.b16 %v374
      %v969 = vunpack.c.h.b16 %v374
      %v970 = vunpack.c.l.b16 %v375
      %v971 = vunpack.c.h.b16 %v375
      %v972 = vunpack.c.l.b16 %v376
      %v973 = vunpack.c.h.b16 %v376
      %v974 = vunpack.c.l.b16 %v377
      %v975 = vunpack.c.h.b16 %v377
      %v976 = vunpack.c.l.b16 %v378
      %v977 = vunpack.c.h.b16 %v378
      %v978 = vunpack.c.l.b16 %v379
      %v979 = vunpack.c.h.b16 %v379
      %v980 = vunpack.c.l.b16 %v380
      %v981 = vunpack.c.h.b16 %v380
      %v982 = vunpack.c.l.b16 %v381
      %v983 = vunpack.c.h.b16 %v381
      %v984 = vunpack.c.l.b16 %v382
      %v985 = vunpack.c.h.b16 %v382
      %v986 = vunpack.c.l.b16 %v383
      %v987 = vunpack.c.h.b16 %v383
      %v988 = vunpack.c.l.b16 %v384
      %v989 = vunpack.c.h.b16 %v384
      %v990 = vunpack.c.l.b16 %v385
      %v991 = vunpack.c.h.b16 %v385
      %v992 = vunpack.c.l.b16 %v386
      %v993 = vunpack.c.h.b16 %v386
      %v994 = vunpack.c.l.b16 %v387
      %v995 = vunpack.c.h.b16 %v387
      %v996 = vunpack.c.l.b16 %v388
      %v997 = vunpack.c.h.b16 %v388
      %v998 = vunpack.c.l.b16 %v389
      %v999 = vunpack.c.h.b16 %v389
      %v1000 = vunpack.c.l.b16 %v390
      %v1001 = vunpack.c.h.b16 %v390
      %v1002 = vunpack.c.l.b16 %v391
      %v1003 = vunpack.c.h.b16 %v391
      %v1004 = vunpack.c.l.b16 %v392
      %v1005 = vunpack.c.h.b16 %v392
      %v1006 = vunpack.c.l.b16 %v393
      %v1007 = vunpack.c.h.b16 %v393
      %v1008 = vunpack.c.l.b16 %v394
      %v1009 = vunpack.c.h.b16 %v394
      %v1010 = vunpack.c.l.b16 %v395
      %v1011 = vunpack.c.h.b16 %v395
      %v1012 = vunpack.c.l.b16 %v396
      %v1013 = vunpack.c.h.b16 %v396
      %v1014 = vunpack.c.l.b16 %v397
      %v1015 = vunpack.c.h.b16 %v397
      %v1016 = vunpack.c.l.b16 %v398
      %v1017 = vunpack.c.h.b16 %v398
      %v1018 = vunpack.c.l.b16 %v399
      %v1019 = vunpack.c.h.b16 %v399
      %v1020 = vunpack.c.l.b16 %v400
      %v1021 = vunpack.c.h.b16 %v400
      %v1022 = vunpack.c.l.b16 %v401
      %v1023 = vunpack.c.h.b16 %v401
      %v1024 = vunpack.c.l.b16 %v402
      %v1025 = vunpack.c.h.b16 %v402
      %v1026 = vunpack.c.l.b16 %v403
      %v1027 = vunpack.c.h.b16 %v403
      %v1028 = vunpack.c.l.b16 %v404
      %v1029 = vunpack.c.h.b16 %v404
      %v1030 = vunpack.c.l.b16 %v405
      %v1031 = vunpack.c.h.b16 %v405
      %v1032 = vunpack.c.l.b16 %v406
      %v1033 = vunpack.c.h.b16 %v406
      %v1034 = vunpack.c.l.b16 %v407
      %v1035 = vunpack.c.h.b16 %v407
      %v1036 = vunpack.c.l.b16 %v408
      %v1037 = vunpack.c.h.b16 %v408
      %v1038 = vunpack.c.l.b16 %v409
      %v1039 = vunpack.c.h.b16 %v409
      %v1040 = vpack.c.b16 %v818, %v816
      %v1041 = vpack.c.b16 %v819, %v817
      %v1042 = vpack.c.b16 %v822, %v820
      %v1043 = vpack.c.b16 %v823, %v821
      %v1044 = vpack.c.b16 %v826, %v824
      %v1045 = vpack.c.b16 %v827, %v825
      %v1046 = vpack.c.b16 %v830, %v828
      %v1047 = vpack.c.b16 %v831, %v829
      %v1048 = vpack.c.b16 %v834, %v832
      %v1049 = vpack.c.b16 %v835, %v833
      %v1050 = vpack.c.b16 %v838, %v836
      %v1051 = vpack.c.b16 %v839, %v837
      %v1052 = vpack.c.b16 %v842, %v840
      %v1053 = vpack.c.b16 %v843, %v841
      %v1054 = vpack.c.b16 %v846, %v844
      %v1055 = vpack.c.b16 %v847, %v845
      %v1056 = vpack.c.b16 %v850, %v848
      %v1057 = vpack.c.b16 %v851, %v849
      %v1058 = vpack.c.b16 %v854, %v852
      %v1059 = vpack.c.b16 %v855, %v853
      %v1060 = vpack.c.b16 %v858, %v856
      %v1061 = vpack.c.b16 %v859, %v857
      %v1062 = vpack.c.b16 %v862, %v860
      %v1063 = vpack.c.b16 %v863, %v861
      %v1064 = vpack.c.b16 %v866, %v864
      %v1065 = vpack.c.b16 %v867, %v865
      %v1066 = vpack.c.b16 %v870, %v868
      %v1067 = vpack.c.b16 %v871, %v869
      %v1068 = vpack.c.b16 %v874, %v872
      %v1069 = vpack.c.b16 %v875, %v873
      %v1070 = vpack.c.b16 %v878, %v876
      %v1071 = vpack.c.b16 %v879, %v877
      %v1072 = vpack.c.b16 %v882, %v880
      %v1073 = vpack.c.b16 %v883, %v881
      %v1074 = vpack.c.b16 %v886, %v884
      %v1075 = vpack.c.b16 %v887, %v885
      %v1076 = vpack.c.b16 %v890, %v888
      %v1077 = vpack.c.b16 %v891, %v889
      %v1078 = vpack.c.b16 %v894, %v892
      %v1079 = vpack.c.b16 %v895, %v893
      %v1080 = vpack.c.b16 %v898, %v896
      %v1081 = vpack.c.b16 %v899, %v897
      %v1082 = vpack.c.b16 %v902, %v900
      %v1083 = vpack.c.b16 %v903, %v901
      %v1084 = vpack.c.b16 %v906, %v904
      %v1085 = vpack.c.b16 %v907, %v905
      %v1086 = vpack.c.b16 %v910, %v908
      %v1087 = vpack.c.b16 %v911, %v909
      %v1088 = vpack.c.b16 %v914, %v912
      %v1089 = vpack.c.b16 %v915, %v913
      %v1090 = vpack.c.b16 %v918, %v916
      %v1091 = vpack.c.b16 %v919, %v917
      %v1092 = vpack.c.b16 %v922, %v920
      %v1093 = vpack.c.b16 %v923, %v921
      %v1094 = vpack.c.b16 %v926, %v924
      %v1095 = vpack.c.b16 %v927, %v925
      %v1096 = vpack.c.b16 %v930, %v928
      %v1097 = vpack.c.b16 %v931, %v929
      %v1098 = vpack.c.b16 %v934, %v932
      %v1099 = vpack.c.b16 %v935, %v933
      %v1100 = vpack.c.b16 %v938, %v936
      %v1101 = vpack.c.b16 %v939, %v937
      %v1102 = vpack.c.b16 %v942, %v940
      %v1103 = vpack.c.b16 %v943, %v941
      %v1104 = vpack.c.b16 %v946, %v944
      %v1105 = vpack.c.b16 %v947, %v945
      %v1106 = vpack.c.b16 %v950, %v948
      %v1107 = vpack.c.b16 %v951, %v949
      %v1108 = vpack.c.b16 %v954, %v952
      %v1109 = vpack.c.b16 %v955, %v953
      %v1110 = vpack.c.b16 %v958, %v956
      %v1111 = vpack.c.b16 %v959, %v957
      %v1112 = vpack.c.b16 %v962, %v960
      %v1113 = vpack.c.b16 %v963, %v961
      %v1114 = vpack.c.b16 %v966, %v964
      %v1115 = vpack.c.b16 %v967, %v965
      %v1116 = vpack.c.b16 %v970, %v968
      %v1117 = vpack.c.b16 %v971, %v969
      %v1118 = vpack.c.b16 %v974, %v972
      %v1119 = vpack.c.b16 %v975, %v973
      %v1120 = vpack.c.b16 %v978, %v976
      %v1121 = vpack.c.b16 %v979, %v977
      %v1122 = vpack.c.b16 %v982, %v980
      %v1123 = vpack.c.b16 %v983, %v981
      %v1124 = vpack.c.b16 %v986, %v984
      %v1125 = vpack.c.b16 %v987, %v985
      %v1126 = vpack.c.b16 %v990, %v988
      %v1127 = vpack.c.b16 %v991, %v989
      %v1128 = vpack.c.b16 %v994, %v992
      %v1129 = vpack.c.b16 %v995, %v993
      %v1130 = vpack.c.b16 %v998, %v996
      %v1131 = vpack.c.b16 %v999, %v997
      %v1132 = vpack.c.b16 %v1002, %v1000
      %v1133 = vpack.c.b16 %v1003, %v1001
      %v1134 = vpack.c.b16 %v1006, %v1004
      %v1135 = vpack.c.b16 %v1007, %v1005
      %v1136 = vpack.c.b16 %v1010, %v1008
      %v1137 = vpack.c.b16 %v1011, %v1009
      %v1138 = vpack.c.b16 %v1014, %v1012
      %v1139 = vpack.c.b16 %v1015, %v1013
      %v1140 = vpack.c.b16 %v1018, %v1016
      %v1141 = vpack.c.b16 %v1019, %v1017
      %v1142 = vpack.c.b16 %v1022, %v1020
      %v1143 = vpack.c.b16 %v1023, %v1021
      %v1144 = vpack.c.b16 %v1026, %v1024
      %v1145 = vpack.c.b16 %v1027, %v1025
      %v1146 = vpack.c.b16 %v1030, %v1028
      %v1147 = vpack.c.b16 %v1031, %v1029
      %v1148 = vpack.c.b16 %v1034, %v1032
      %v1149 = vpack.c.b16 %v1035, %v1033
      %v1150 = vpack.c.b16 %v1038, %v1036
      %v1151 = vpack.c.b16 %v1039, %v1037
      %1264 = vmatpush.bf16.msra.mxu0 %v1054
      %1265 = vmatpush.bf16.msra.mxu0 %v1052
      %1266 = vmatpush.bf16.msra.mxu0 %v1050
      %1267 = vmatpush.bf16.msra.mxu0 %v1048
      %1268 = vmatpush.bf16.msra.mxu0 %v1046
      %1269 = vmatpush.bf16.msra.mxu0 %v1044
      %1270 = vmatpush.bf16.msra.mxu0 %v1042
      %1271 = vmatpush.bf16.msra.mxu0 %v1040
      %1272 = vmatmul.bf16.gmra.mxu0 %v592
      %v1273 = vpop.f32.mrf.mxu0
      %v1274 = vadd.f32 %v412, %v1273
      %v1275 = vpop.f32.mrf.mxu0
      %v1276 = vadd.f32 %v412, %v1275
      %1277 = vmatmul.bf16.gmra.mxu0 %v599
      %v1278 = vpop.f32.mrf.mxu0
      %v1279 = vadd.f32 %v412, %v1278
      %v1280 = vpop.f32.mrf.mxu0
      %v1281 = vadd.f32 %v412, %v1280
      %1282 = vmatmul.bf16.gmra.mxu0 %v606
      %v1283 = vpop.f32.mrf.mxu0
      %v1284 = vadd.f32 %v412, %v1283
      %v1285 = vpop.f32.mrf.mxu0
      %v1286 = vadd.f32 %v412, %v1285
      %1287 = vmatmul.bf16.gmra.mxu0 %v613
      %v1288 = vpop.f32.mrf.mxu0
      %v1289 = vadd.f32 %v412, %v1288
      %v1290 = vpop.f32.mrf.mxu0
      %v1291 = vadd.f32 %v412, %v1290
      %1292 = vmatmul.bf16.gmra.mxu0 %v620
      %v1293 = vpop.f32.mrf.mxu0
      %v1294 = vadd.f32 %v412, %v1293
      %v1295 = vpop.f32.mrf.mxu0
      %v1296 = vadd.f32 %v412, %v1295
      %1297 = vmatmul.bf16.gmra.mxu0 %v627
      %v1298 = vpop.f32.mrf.mxu0
      %v1299 = vadd.f32 %v412, %v1298
      %v1300 = vpop.f32.mrf.mxu0
      %v1301 = vadd.f32 %v412, %v1300
      %1302 = vmatmul.bf16.gmra.mxu0 %v634
      %v1303 = vpop.f32.mrf.mxu0
      %v1304 = vadd.f32 %v412, %v1303
      %v1305 = vpop.f32.mrf.mxu0
      %v1306 = vadd.f32 %v412, %v1305
      %1307 = vmatmul.bf16.gmra.mxu0 %v641
      %v1308 = vpop.f32.mrf.mxu0
      %v1309 = vadd.f32 %v412, %v1308
      %v1310 = vpop.f32.mrf.mxu0
      %v1311 = vadd.f32 %v412, %v1310
      %1312 = vdwg.mxu0
      %1313 = vmatpush.bf16.msra.mxu0 %v1070
      %1314 = vmatpush.bf16.msra.mxu0 %v1068
      %1315 = vmatpush.bf16.msra.mxu0 %v1066
      %1316 = vmatpush.bf16.msra.mxu0 %v1064
      %1317 = vmatpush.bf16.msra.mxu0 %v1062
      %1318 = vmatpush.bf16.msra.mxu0 %v1060
      %1319 = vmatpush.bf16.msra.mxu0 %v1058
      %1320 = vmatpush.bf16.msra.mxu0 %v1056
      %1321 = vmatmul.bf16.gmra.mxu0 %v593
      %v1322 = vpop.f32.mrf.mxu0
      %v1323 = vadd.f32 %v1274, %v1322
      %v1324 = vpop.f32.mrf.mxu0
      %v1325 = vadd.f32 %v1276, %v1324
      %1326 = vmatmul.bf16.gmra.mxu0 %v600
      %v1327 = vpop.f32.mrf.mxu0
      %v1328 = vadd.f32 %v1279, %v1327
      %v1329 = vpop.f32.mrf.mxu0
      %v1330 = vadd.f32 %v1281, %v1329
      %1331 = vmatmul.bf16.gmra.mxu0 %v607
      %v1332 = vpop.f32.mrf.mxu0
      %v1333 = vadd.f32 %v1284, %v1332
      %v1334 = vpop.f32.mrf.mxu0
      %v1335 = vadd.f32 %v1286, %v1334
      %1336 = vmatmul.bf16.gmra.mxu0 %v614
      %v1337 = vpop.f32.mrf.mxu0
      %v1338 = vadd.f32 %v1289, %v1337
      %v1339 = vpop.f32.mrf.mxu0
      %v1340 = vadd.f32 %v1291, %v1339
      %1341 = vmatmul.bf16.gmra.mxu0 %v621
      %v1342 = vpop.f32.mrf.mxu0
      %v1343 = vadd.f32 %v1294, %v1342
      %v1344 = vpop.f32.mrf.mxu0
      %v1345 = vadd.f32 %v1296, %v1344
      %1346 = vmatmul.bf16.gmra.mxu0 %v628
      %v1347 = vpop.f32.mrf.mxu0
      %v1348 = vadd.f32 %v1299, %v1347
      %v1349 = vpop.f32.mrf.mxu0
      %v1350 = vadd.f32 %v1301, %v1349
      %1351 = vmatmul.bf16.gmra.mxu0 %v635
      %v1352 = vpop.f32.mrf.mxu0
      %v1353 = vadd.f32 %v1304, %v1352
      %v1354 = vpop.f32.mrf.mxu0
      %v1355 = vadd.f32 %v1306, %v1354
      %1356 = vmatmul.bf16.gmra.mxu0 %v642
      %v1357 = vpop.f32.mrf.mxu0
      %v1358 = vadd.f32 %v1309, %v1357
      %v1359 = vpop.f32.mrf.mxu0
      %v1360 = vadd.f32 %v1311, %v1359
      %1361 = vdwg.mxu0
      %1362 = vmatpush.bf16.msra.mxu0 %v1086
      %1363 = vmatpush.bf16.msra.mxu0 %v1084
      %1364 = vmatpush.bf16.msra.mxu0 %v1082
      %1365 = vmatpush.bf16.msra.mxu0 %v1080
      %1366 = vmatpush.bf16.msra.mxu0 %v1078
      %1367 = vmatpush.bf16.msra.mxu0 %v1076
      %1368 = vmatpush.bf16.msra.mxu0 %v1074
      %1369 = vmatpush.bf16.msra.mxu0 %v1072
      %1370 = vmatmul.bf16.gmra.mxu0 %v594
      %v1371 = vpop.f32.mrf.mxu0
      %v1372 = vadd.f32 %v1323, %v1371
      %v1373 = vpop.f32.mrf.mxu0
      %v1374 = vadd.f32 %v1325, %v1373
      %1375 = vmatmul.bf16.gmra.mxu0 %v601
      %v1376 = vpop.f32.mrf.mxu0
      %v1377 = vadd.f32 %v1328, %v1376
      %v1378 = vpop.f32.mrf.mxu0
      %v1379 = vadd.f32 %v1330, %v1378
      %1380 = vmatmul.bf16.gmra.mxu0 %v608
      %v1381 = vpop.f32.mrf.mxu0
      %v1382 = vadd.f32 %v1333, %v1381
      %v1383 = vpop.f32.mrf.mxu0
      %v1384 = vadd.f32 %v1335, %v1383
      %1385 = vmatmul.bf16.gmra.mxu0 %v615
      %v1386 = vpop.f32.mrf.mxu0
      %v1387 = vadd.f32 %v1338, %v1386
      %v1388 = vpop.f32.mrf.mxu0
      %v1389 = vadd.f32 %v1340, %v1388
      %1390 = vmatmul.bf16.gmra.mxu0 %v622
      %v1391 = vpop.f32.mrf.mxu0
      %v1392 = vadd.f32 %v1343, %v1391
      %v1393 = vpop.f32.mrf.mxu0
      %v1394 = vadd.f32 %v1345, %v1393
      %1395 = vmatmul.bf16.gmra.mxu0 %v629
      %v1396 = vpop.f32.mrf.mxu0
      %v1397 = vadd.f32 %v1348, %v1396
      %v1398 = vpop.f32.mrf.mxu0
      %v1399 = vadd.f32 %v1350, %v1398
      %1400 = vmatmul.bf16.gmra.mxu0 %v636
      %v1401 = vpop.f32.mrf.mxu0
      %v1402 = vadd.f32 %v1353, %v1401
      %v1403 = vpop.f32.mrf.mxu0
      %v1404 = vadd.f32 %v1355, %v1403
      %1405 = vmatmul.bf16.gmra.mxu0 %v643
      %v1406 = vpop.f32.mrf.mxu0
      %v1407 = vadd.f32 %v1358, %v1406
      %v1408 = vpop.f32.mrf.mxu0
      %v1409 = vadd.f32 %v1360, %v1408
      %1410 = vdwg.mxu0
      %1411 = vmatpush.bf16.msra.mxu0 %v1102
      %1412 = vmatpush.bf16.msra.mxu0 %v1100
      %1413 = vmatpush.bf16.msra.mxu0 %v1098
      %1414 = vmatpush.bf16.msra.mxu0 %v1096
      %1415 = vmatpush.bf16.msra.mxu0 %v1094
      %1416 = vmatpush.bf16.msra.mxu0 %v1092
      %1417 = vmatpush.bf16.msra.mxu0 %v1090
      %1418 = vmatpush.bf16.msra.mxu0 %v1088
      %1419 = vmatmul.bf16.gmra.mxu0 %v595
      %v1420 = vpop.f32.mrf.mxu0
      %v1421 = vadd.f32 %v1372, %v1420
      %v1422 = vpop.f32.mrf.mxu0
      %v1423 = vadd.f32 %v1374, %v1422
      %1424 = vmatmul.bf16.gmra.mxu0 %v602
      %v1425 = vpop.f32.mrf.mxu0
      %v1426 = vadd.f32 %v1377, %v1425
      %v1427 = vpop.f32.mrf.mxu0
      %v1428 = vadd.f32 %v1379, %v1427
      %1429 = vmatmul.bf16.gmra.mxu0 %v609
      %v1430 = vpop.f32.mrf.mxu0
      %v1431 = vadd.f32 %v1382, %v1430
      %v1432 = vpop.f32.mrf.mxu0
      %v1433 = vadd.f32 %v1384, %v1432
      %1434 = vmatmul.bf16.gmra.mxu0 %v616
      %v1435 = vpop.f32.mrf.mxu0
      %v1436 = vadd.f32 %v1387, %v1435
      %v1437 = vpop.f32.mrf.mxu0
      %v1438 = vadd.f32 %v1389, %v1437
      %1439 = vmatmul.bf16.gmra.mxu0 %v623
      %v1440 = vpop.f32.mrf.mxu0
      %v1441 = vadd.f32 %v1392, %v1440
      %v1442 = vpop.f32.mrf.mxu0
      %v1443 = vadd.f32 %v1394, %v1442
      %1444 = vmatmul.bf16.gmra.mxu0 %v630
      %v1445 = vpop.f32.mrf.mxu0
      %v1446 = vadd.f32 %v1397, %v1445
      %v1447 = vpop.f32.mrf.mxu0
      %v1448 = vadd.f32 %v1399, %v1447
      %1449 = vmatmul.bf16.gmra.mxu0 %v637
      %v1450 = vpop.f32.mrf.mxu0
      %v1451 = vadd.f32 %v1402, %v1450
      %v1452 = vpop.f32.mrf.mxu0
      %v1453 = vadd.f32 %v1404, %v1452
      %1454 = vmatmul.bf16.gmra.mxu0 %v644
      %v1455 = vpop.f32.mrf.mxu0
      %v1456 = vadd.f32 %v1407, %v1455
      %v1457 = vpop.f32.mrf.mxu0
      %v1458 = vadd.f32 %v1409, %v1457
      %1459 = vdwg.mxu0
      %1460 = vmatpush.bf16.msra.mxu0 %v1118
      %1461 = vmatpush.bf16.msra.mxu0 %v1116
      %1462 = vmatpush.bf16.msra.mxu0 %v1114
      %1463 = vmatpush.bf16.msra.mxu0 %v1112
      %1464 = vmatpush.bf16.msra.mxu0 %v1110
      %1465 = vmatpush.bf16.msra.mxu0 %v1108
      %1466 = vmatpush.bf16.msra.mxu0 %v1106
      %1467 = vmatpush.bf16.msra.mxu0 %v1104
      %1468 = vmatmul.bf16.gmra.mxu0 %v596
      %v1469 = vpop.f32.mrf.mxu0
      %v1470 = vadd.f32 %v1421, %v1469
      %v1471 = vpop.f32.mrf.mxu0
      %v1472 = vadd.f32 %v1423, %v1471
      %1473 = vmatmul.bf16.gmra.mxu0 %v603
      %v1474 = vpop.f32.mrf.mxu0
      %v1475 = vadd.f32 %v1426, %v1474
      %v1476 = vpop.f32.mrf.mxu0
      %v1477 = vadd.f32 %v1428, %v1476
      %1478 = vmatmul.bf16.gmra.mxu0 %v610
      %v1479 = vpop.f32.mrf.mxu0
      %v1480 = vadd.f32 %v1431, %v1479
      %v1481 = vpop.f32.mrf.mxu0
      %v1482 = vadd.f32 %v1433, %v1481
      %1483 = vmatmul.bf16.gmra.mxu0 %v617
      %v1484 = vpop.f32.mrf.mxu0
      %v1485 = vadd.f32 %v1436, %v1484
      %v1486 = vpop.f32.mrf.mxu0
      %v1487 = vadd.f32 %v1438, %v1486
      %1488 = vmatmul.bf16.gmra.mxu0 %v624
      %v1489 = vpop.f32.mrf.mxu0
      %v1490 = vadd.f32 %v1441, %v1489
      %v1491 = vpop.f32.mrf.mxu0
      %v1492 = vadd.f32 %v1443, %v1491
      %1493 = vmatmul.bf16.gmra.mxu0 %v631
      %v1494 = vpop.f32.mrf.mxu0
      %v1495 = vadd.f32 %v1446, %v1494
      %v1496 = vpop.f32.mrf.mxu0
      %v1497 = vadd.f32 %v1448, %v1496
      %1498 = vmatmul.bf16.gmra.mxu0 %v638
      %v1499 = vpop.f32.mrf.mxu0
      %v1500 = vadd.f32 %v1451, %v1499
      %v1501 = vpop.f32.mrf.mxu0
      %v1502 = vadd.f32 %v1453, %v1501
      %1503 = vmatmul.bf16.gmra.mxu0 %v645
      %v1504 = vpop.f32.mrf.mxu0
      %v1505 = vadd.f32 %v1456, %v1504
      %v1506 = vpop.f32.mrf.mxu0
      %v1507 = vadd.f32 %v1458, %v1506
      %1508 = vdwg.mxu0
      %1509 = vmatpush.bf16.msra.mxu0 %v1134
      %1510 = vmatpush.bf16.msra.mxu0 %v1132
      %1511 = vmatpush.bf16.msra.mxu0 %v1130
      %1512 = vmatpush.bf16.msra.mxu0 %v1128
      %1513 = vmatpush.bf16.msra.mxu0 %v1126
      %1514 = vmatpush.bf16.msra.mxu0 %v1124
      %1515 = vmatpush.bf16.msra.mxu0 %v1122
      %1516 = vmatpush.bf16.msra.mxu0 %v1120
      %1517 = vmatmul.bf16.gmra.mxu0 %v597
      %v1518 = vpop.f32.mrf.mxu0
      %v1519 = vadd.f32 %v1470, %v1518
      %v1520 = vpop.f32.mrf.mxu0
      %v1521 = vadd.f32 %v1472, %v1520
      %1522 = vmatmul.bf16.gmra.mxu0 %v604
      %v1523 = vpop.f32.mrf.mxu0
      %v1524 = vadd.f32 %v1475, %v1523
      %v1525 = vpop.f32.mrf.mxu0
      %v1526 = vadd.f32 %v1477, %v1525
      %1527 = vmatmul.bf16.gmra.mxu0 %v611
      %v1528 = vpop.f32.mrf.mxu0
      %v1529 = vadd.f32 %v1480, %v1528
      %v1530 = vpop.f32.mrf.mxu0
      %v1531 = vadd.f32 %v1482, %v1530
      %1532 = vmatmul.bf16.gmra.mxu0 %v618
      %v1533 = vpop.f32.mrf.mxu0
      %v1534 = vadd.f32 %v1485, %v1533
      %v1535 = vpop.f32.mrf.mxu0
      %v1536 = vadd.f32 %v1487, %v1535
      %1537 = vmatmul.bf16.gmra.mxu0 %v625
      %v1538 = vpop.f32.mrf.mxu0
      %v1539 = vadd.f32 %v1490, %v1538
      %v1540 = vpop.f32.mrf.mxu0
      %v1541 = vadd.f32 %v1492, %v1540
      %1542 = vmatmul.bf16.gmra.mxu0 %v632
      %v1543 = vpop.f32.mrf.mxu0
      %v1544 = vadd.f32 %v1495, %v1543
      %v1545 = vpop.f32.mrf.mxu0
      %v1546 = vadd.f32 %v1497, %v1545
      %1547 = vmatmul.bf16.gmra.mxu0 %v639
      %v1548 = vpop.f32.mrf.mxu0
      %v1549 = vadd.f32 %v1500, %v1548
      %v1550 = vpop.f32.mrf.mxu0
      %v1551 = vadd.f32 %v1502, %v1550
      %1552 = vmatmul.bf16.gmra.mxu0 %v646
      %v1553 = vpop.f32.mrf.mxu0
      %v1554 = vadd.f32 %v1505, %v1553
      %v1555 = vpop.f32.mrf.mxu0
      %v1556 = vadd.f32 %v1507, %v1555
      %1557 = vdwg.mxu0
      %1558 = vmatpush.bf16.msra.mxu0 %v1150
      %1559 = vmatpush.bf16.msra.mxu0 %v1148
      %1560 = vmatpush.bf16.msra.mxu0 %v1146
      %1561 = vmatpush.bf16.msra.mxu0 %v1144
      %1562 = vmatpush.bf16.msra.mxu0 %v1142
      %1563 = vmatpush.bf16.msra.mxu0 %v1140
      %1564 = vmatpush.bf16.msra.mxu0 %v1138
      %1565 = vmatpush.bf16.msra.mxu0 %v1136
      %1566 = vmatmul.bf16.gmra.mxu0 %v598
      %v1567 = vpop.f32.mrf.mxu0
      %v1568 = vadd.f32 %v1519, %v1567
      %v1569 = vpop.f32.mrf.mxu0
      %v1570 = vadd.f32 %v1521, %v1569
      %1571 = vmatmul.bf16.gmra.mxu0 %v605
      %v1572 = vpop.f32.mrf.mxu0
      %v1573 = vadd.f32 %v1524, %v1572
      %v1574 = vpop.f32.mrf.mxu0
      %v1575 = vadd.f32 %v1526, %v1574
      %1576 = vmatmul.bf16.gmra.mxu0 %v612
      %v1577 = vpop.f32.mrf.mxu0
      %v1578 = vadd.f32 %v1529, %v1577
      %v1579 = vpop.f32.mrf.mxu0
      %v1580 = vadd.f32 %v1531, %v1579
      %1581 = vmatmul.bf16.gmra.mxu0 %v619
      %v1582 = vpop.f32.mrf.mxu0
      %v1583 = vadd.f32 %v1534, %v1582
      %v1584 = vpop.f32.mrf.mxu0
      %v1585 = vadd.f32 %v1536, %v1584
      %1586 = vmatmul.bf16.gmra.mxu0 %v626
      %v1587 = vpop.f32.mrf.mxu0
      %v1588 = vadd.f32 %v1539, %v1587
      %v1589 = vpop.f32.mrf.mxu0
      %v1590 = vadd.f32 %v1541, %v1589
      %1591 = vmatmul.bf16.gmra.mxu0 %v633
      %v1592 = vpop.f32.mrf.mxu0
      %v1593 = vadd.f32 %v1544, %v1592
      %v1594 = vpop.f32.mrf.mxu0
      %v1595 = vadd.f32 %v1546, %v1594
      %1596 = vmatmul.bf16.gmra.mxu0 %v640
      %v1597 = vpop.f32.mrf.mxu0
      %v1598 = vadd.f32 %v1549, %v1597
      %v1599 = vpop.f32.mrf.mxu0
      %v1600 = vadd.f32 %v1551, %v1599
      %1601 = vmatmul.bf16.gmra.mxu0 %v647
      %v1602 = vpop.f32.mrf.mxu0
      %v1603 = vadd.f32 %v1554, %v1602
      %v1604 = vpop.f32.mrf.mxu0
      %v1605 = vadd.f32 %v1556, %v1604
      %1606 = vdwg.mxu0
      %1607 = vmatpush.bf16.msra.mxu0 %v1055
      %1608 = vmatpush.bf16.msra.mxu0 %v1053
      %1609 = vmatpush.bf16.msra.mxu0 %v1051
      %1610 = vmatpush.bf16.msra.mxu0 %v1049
      %1611 = vmatpush.bf16.msra.mxu0 %v1047
      %1612 = vmatpush.bf16.msra.mxu0 %v1045
      %1613 = vmatpush.bf16.msra.mxu0 %v1043
      %1614 = vmatpush.bf16.msra.mxu0 %v1041
      %1615 = vmatmul.bf16.gmra.mxu0 %v592
      %v1616 = vpop.f32.mrf.mxu0
      %v1617 = vadd.f32 %v413, %v1616
      %v1618 = vpop.f32.mrf.mxu0
      %v1619 = vadd.f32 %v413, %v1618
      %1620 = vmatmul.bf16.gmra.mxu0 %v599
      %v1621 = vpop.f32.mrf.mxu0
      %v1622 = vadd.f32 %v413, %v1621
      %v1623 = vpop.f32.mrf.mxu0
      %v1624 = vadd.f32 %v413, %v1623
      %1625 = vmatmul.bf16.gmra.mxu0 %v606
      %v1626 = vpop.f32.mrf.mxu0
      %v1627 = vadd.f32 %v413, %v1626
      %v1628 = vpop.f32.mrf.mxu0
      %v1629 = vadd.f32 %v413, %v1628
      %1630 = vmatmul.bf16.gmra.mxu0 %v613
      %v1631 = vpop.f32.mrf.mxu0
      %v1632 = vadd.f32 %v413, %v1631
      %v1633 = vpop.f32.mrf.mxu0
      %v1634 = vadd.f32 %v413, %v1633
      %1635 = vmatmul.bf16.gmra.mxu0 %v620
      %v1636 = vpop.f32.mrf.mxu0
      %v1637 = vadd.f32 %v413, %v1636
      %v1638 = vpop.f32.mrf.mxu0
      %v1639 = vadd.f32 %v413, %v1638
      %1640 = vmatmul.bf16.gmra.mxu0 %v627
      %v1641 = vpop.f32.mrf.mxu0
      %v1642 = vadd.f32 %v413, %v1641
      %v1643 = vpop.f32.mrf.mxu0
      %v1644 = vadd.f32 %v413, %v1643
      %1645 = vmatmul.bf16.gmra.mxu0 %v634
      %v1646 = vpop.f32.mrf.mxu0
      %v1647 = vadd.f32 %v413, %v1646
      %v1648 = vpop.f32.mrf.mxu0
      %v1649 = vadd.f32 %v413, %v1648
      %1650 = vmatmul.bf16.gmra.mxu0 %v641
      %v1651 = vpop.f32.mrf.mxu0
      %v1652 = vadd.f32 %v413, %v1651
      %v1653 = vpop.f32.mrf.mxu0
      %v1654 = vadd.f32 %v413, %v1653
      %1655 = vdwg.mxu0
      %1656 = vmatpush.bf16.msra.mxu0 %v1071
      %1657 = vmatpush.bf16.msra.mxu0 %v1069
      %1658 = vmatpush.bf16.msra.mxu0 %v1067
      %1659 = vmatpush.bf16.msra.mxu0 %v1065
      %1660 = vmatpush.bf16.msra.mxu0 %v1063
      %1661 = vmatpush.bf16.msra.mxu0 %v1061
      %1662 = vmatpush.bf16.msra.mxu0 %v1059
      %1663 = vmatpush.bf16.msra.mxu0 %v1057
      %1664 = vmatmul.bf16.gmra.mxu0 %v593
      %v1665 = vpop.f32.mrf.mxu0
      %v1666 = vadd.f32 %v1617, %v1665
      %v1667 = vpop.f32.mrf.mxu0
      %v1668 = vadd.f32 %v1619, %v1667
      %1669 = vmatmul.bf16.gmra.mxu0 %v600
      %v1670 = vpop.f32.mrf.mxu0
      %v1671 = vadd.f32 %v1622, %v1670
      %v1672 = vpop.f32.mrf.mxu0
      %v1673 = vadd.f32 %v1624, %v1672
      %1674 = vmatmul.bf16.gmra.mxu0 %v607
      %v1675 = vpop.f32.mrf.mxu0
      %v1676 = vadd.f32 %v1627, %v1675
      %v1677 = vpop.f32.mrf.mxu0
      %v1678 = vadd.f32 %v1629, %v1677
      %1679 = vmatmul.bf16.gmra.mxu0 %v614
      %v1680 = vpop.f32.mrf.mxu0
      %v1681 = vadd.f32 %v1632, %v1680
      %v1682 = vpop.f32.mrf.mxu0
      %v1683 = vadd.f32 %v1634, %v1682
      %1684 = vmatmul.bf16.gmra.mxu0 %v621
      %v1685 = vpop.f32.mrf.mxu0
      %v1686 = vadd.f32 %v1637, %v1685
      %v1687 = vpop.f32.mrf.mxu0
      %v1688 = vadd.f32 %v1639, %v1687
      %1689 = vmatmul.bf16.gmra.mxu0 %v628
      %v1690 = vpop.f32.mrf.mxu0
      %v1691 = vadd.f32 %v1642, %v1690
      %v1692 = vpop.f32.mrf.mxu0
      %v1693 = vadd.f32 %v1644, %v1692
      %1694 = vmatmul.bf16.gmra.mxu0 %v635
      %v1695 = vpop.f32.mrf.mxu0
      %v1696 = vadd.f32 %v1647, %v1695
      %v1697 = vpop.f32.mrf.mxu0
      %v1698 = vadd.f32 %v1649, %v1697
      %1699 = vmatmul.bf16.gmra.mxu0 %v642
      %v1700 = vpop.f32.mrf.mxu0
      %v1701 = vadd.f32 %v1652, %v1700
      %v1702 = vpop.f32.mrf.mxu0
      %v1703 = vadd.f32 %v1654, %v1702
      %1704 = vdwg.mxu0
      %1705 = vmatpush.bf16.msra.mxu0 %v1087
      %1706 = vmatpush.bf16.msra.mxu0 %v1085
      %1707 = vmatpush.bf16.msra.mxu0 %v1083
      %1708 = vmatpush.bf16.msra.mxu0 %v1081
      %1709 = vmatpush.bf16.msra.mxu0 %v1079
      %1710 = vmatpush.bf16.msra.mxu0 %v1077
      %1711 = vmatpush.bf16.msra.mxu0 %v1075
      %1712 = vmatpush.bf16.msra.mxu0 %v1073
      %1713 = vmatmul.bf16.gmra.mxu0 %v594
      %v1714 = vpop.f32.mrf.mxu0
      %v1715 = vadd.f32 %v1666, %v1714
      %v1716 = vpop.f32.mrf.mxu0
      %v1717 = vadd.f32 %v1668, %v1716
      %1718 = vmatmul.bf16.gmra.mxu0 %v601
      %v1719 = vpop.f32.mrf.mxu0
      %v1720 = vadd.f32 %v1671, %v1719
      %v1721 = vpop.f32.mrf.mxu0
      %v1722 = vadd.f32 %v1673, %v1721
      %1723 = vmatmul.bf16.gmra.mxu0 %v608
      %v1724 = vpop.f32.mrf.mxu0
      %v1725 = vadd.f32 %v1676, %v1724
      %v1726 = vpop.f32.mrf.mxu0
      %v1727 = vadd.f32 %v1678, %v1726
      %1728 = vmatmul.bf16.gmra.mxu0 %v615
      %v1729 = vpop.f32.mrf.mxu0
      %v1730 = vadd.f32 %v1681, %v1729
      %v1731 = vpop.f32.mrf.mxu0
      %v1732 = vadd.f32 %v1683, %v1731
      %1733 = vmatmul.bf16.gmra.mxu0 %v622
      %v1734 = vpop.f32.mrf.mxu0
      %v1735 = vadd.f32 %v1686, %v1734
      %v1736 = vpop.f32.mrf.mxu0
      %v1737 = vadd.f32 %v1688, %v1736
      %1738 = vmatmul.bf16.gmra.mxu0 %v629
      %v1739 = vpop.f32.mrf.mxu0
      %v1740 = vadd.f32 %v1691, %v1739
      %v1741 = vpop.f32.mrf.mxu0
      %v1742 = vadd.f32 %v1693, %v1741
      %1743 = vmatmul.bf16.gmra.mxu0 %v636
      %v1744 = vpop.f32.mrf.mxu0
      %v1745 = vadd.f32 %v1696, %v1744
      %v1746 = vpop.f32.mrf.mxu0
      %v1747 = vadd.f32 %v1698, %v1746
      %1748 = vmatmul.bf16.gmra.mxu0 %v643
      %v1749 = vpop.f32.mrf.mxu0
      %v1750 = vadd.f32 %v1701, %v1749
      %v1751 = vpop.f32.mrf.mxu0
      %v1752 = vadd.f32 %v1703, %v1751
      %1753 = vdwg.mxu0
      %1754 = vmatpush.bf16.msra.mxu0 %v1103
      %1755 = vmatpush.bf16.msra.mxu0 %v1101
      %1756 = vmatpush.bf16.msra.mxu0 %v1099
      %1757 = vmatpush.bf16.msra.mxu0 %v1097
      %1758 = vmatpush.bf16.msra.mxu0 %v1095
      %1759 = vmatpush.bf16.msra.mxu0 %v1093
      %1760 = vmatpush.bf16.msra.mxu0 %v1091
      %1761 = vmatpush.bf16.msra.mxu0 %v1089
      %1762 = vmatmul.bf16.gmra.mxu0 %v595
      %v1763 = vpop.f32.mrf.mxu0
      %v1764 = vadd.f32 %v1715, %v1763
      %v1765 = vpop.f32.mrf.mxu0
      %v1766 = vadd.f32 %v1717, %v1765
      %1767 = vmatmul.bf16.gmra.mxu0 %v602
      %v1768 = vpop.f32.mrf.mxu0
      %v1769 = vadd.f32 %v1720, %v1768
      %v1770 = vpop.f32.mrf.mxu0
      %v1771 = vadd.f32 %v1722, %v1770
      %1772 = vmatmul.bf16.gmra.mxu0 %v609
      %v1773 = vpop.f32.mrf.mxu0
      %v1774 = vadd.f32 %v1725, %v1773
      %v1775 = vpop.f32.mrf.mxu0
      %v1776 = vadd.f32 %v1727, %v1775
      %1777 = vmatmul.bf16.gmra.mxu0 %v616
      %v1778 = vpop.f32.mrf.mxu0
      %v1779 = vadd.f32 %v1730, %v1778
      %v1780 = vpop.f32.mrf.mxu0
      %v1781 = vadd.f32 %v1732, %v1780
      %1782 = vmatmul.bf16.gmra.mxu0 %v623
      %v1783 = vpop.f32.mrf.mxu0
      %v1784 = vadd.f32 %v1735, %v1783
      %v1785 = vpop.f32.mrf.mxu0
      %v1786 = vadd.f32 %v1737, %v1785
      %1787 = vmatmul.bf16.gmra.mxu0 %v630
      %v1788 = vpop.f32.mrf.mxu0
      %v1789 = vadd.f32 %v1740, %v1788
      %v1790 = vpop.f32.mrf.mxu0
      %v1791 = vadd.f32 %v1742, %v1790
      %1792 = vmatmul.bf16.gmra.mxu0 %v637
      %v1793 = vpop.f32.mrf.mxu0
      %v1794 = vadd.f32 %v1745, %v1793
      %v1795 = vpop.f32.mrf.mxu0
      %v1796 = vadd.f32 %v1747, %v1795
      %1797 = vmatmul.bf16.gmra.mxu0 %v644
      %v1798 = vpop.f32.mrf.mxu0
      %v1799 = vadd.f32 %v1750, %v1798
      %v1800 = vpop.f32.mrf.mxu0
      %v1801 = vadd.f32 %v1752, %v1800
      %1802 = vdwg.mxu0
      %1803 = vmatpush.bf16.msra.mxu0 %v1119
      %1804 = vmatpush.bf16.msra.mxu0 %v1117
      %1805 = vmatpush.bf16.msra.mxu0 %v1115
      %1806 = vmatpush.bf16.msra.mxu0 %v1113
      %1807 = vmatpush.bf16.msra.mxu0 %v1111
      %1808 = vmatpush.bf16.msra.mxu0 %v1109
      %1809 = vmatpush.bf16.msra.mxu0 %v1107
      %1810 = vmatpush.bf16.msra.mxu0 %v1105
      %1811 = vmatmul.bf16.gmra.mxu0 %v596
      %v1812 = vpop.f32.mrf.mxu0
      %v1813 = vadd.f32 %v1764, %v1812
      %v1814 = vpop.f32.mrf.mxu0
      %v1815 = vadd.f32 %v1766, %v1814
      %1816 = vmatmul.bf16.gmra.mxu0 %v603
      %v1817 = vpop.f32.mrf.mxu0
      %v1818 = vadd.f32 %v1769, %v1817
      %v1819 = vpop.f32.mrf.mxu0
      %v1820 = vadd.f32 %v1771, %v1819
      %1821 = vmatmul.bf16.gmra.mxu0 %v610
      %v1822 = vpop.f32.mrf.mxu0
      %v1823 = vadd.f32 %v1774, %v1822
      %v1824 = vpop.f32.mrf.mxu0
      %v1825 = vadd.f32 %v1776, %v1824
      %1826 = vmatmul.bf16.gmra.mxu0 %v617
      %v1827 = vpop.f32.mrf.mxu0
      %v1828 = vadd.f32 %v1779, %v1827
      %v1829 = vpop.f32.mrf.mxu0
      %v1830 = vadd.f32 %v1781, %v1829
      %1831 = vmatmul.bf16.gmra.mxu0 %v624
      %v1832 = vpop.f32.mrf.mxu0
      %v1833 = vadd.f32 %v1784, %v1832
      %v1834 = vpop.f32.mrf.mxu0
      %v1835 = vadd.f32 %v1786, %v1834
      %1836 = vmatmul.bf16.gmra.mxu0 %v631
      %v1837 = vpop.f32.mrf.mxu0
      %v1838 = vadd.f32 %v1789, %v1837
      %v1839 = vpop.f32.mrf.mxu0
      %v1840 = vadd.f32 %v1791, %v1839
      %1841 = vmatmul.bf16.gmra.mxu0 %v638
      %v1842 = vpop.f32.mrf.mxu0
      %v1843 = vadd.f32 %v1794, %v1842
      %v1844 = vpop.f32.mrf.mxu0
      %v1845 = vadd.f32 %v1796, %v1844
      %1846 = vmatmul.bf16.gmra.mxu0 %v645
      %v1847 = vpop.f32.mrf.mxu0
      %v1848 = vadd.f32 %v1799, %v1847
      %v1849 = vpop.f32.mrf.mxu0
      %v1850 = vadd.f32 %v1801, %v1849
      %1851 = vdwg.mxu0
      %1852 = vmatpush.bf16.msra.mxu0 %v1135
      %1853 = vmatpush.bf16.msra.mxu0 %v1133
      %1854 = vmatpush.bf16.msra.mxu0 %v1131
      %1855 = vmatpush.bf16.msra.mxu0 %v1129
      %1856 = vmatpush.bf16.msra.mxu0 %v1127
      %1857 = vmatpush.bf16.msra.mxu0 %v1125
      %1858 = vmatpush.bf16.msra.mxu0 %v1123
      %1859 = vmatpush.bf16.msra.mxu0 %v1121
      %1860 = vmatmul.bf16.gmra.mxu0 %v597
      %v1861 = vpop.f32.mrf.mxu0
      %v1862 = vadd.f32 %v1813, %v1861
      %v1863 = vpop.f32.mrf.mxu0
      %v1864 = vadd.f32 %v1815, %v1863
      %1865 = vmatmul.bf16.gmra.mxu0 %v604
      %v1866 = vpop.f32.mrf.mxu0
      %v1867 = vadd.f32 %v1818, %v1866
      %v1868 = vpop.f32.mrf.mxu0
      %v1869 = vadd.f32 %v1820, %v1868
      %1870 = vmatmul.bf16.gmra.mxu0 %v611
      %v1871 = vpop.f32.mrf.mxu0
      %v1872 = vadd.f32 %v1823, %v1871
      %v1873 = vpop.f32.mrf.mxu0
      %v1874 = vadd.f32 %v1825, %v1873
      %1875 = vmatmul.bf16.gmra.mxu0 %v618
      %v1876 = vpop.f32.mrf.mxu0
      %v1877 = vadd.f32 %v1828, %v1876
      %v1878 = vpop.f32.mrf.mxu0
      %v1879 = vadd.f32 %v1830, %v1878
      %1880 = vmatmul.bf16.gmra.mxu0 %v625
      %v1881 = vpop.f32.mrf.mxu0
      %v1882 = vadd.f32 %v1833, %v1881
      %v1883 = vpop.f32.mrf.mxu0
      %v1884 = vadd.f32 %v1835, %v1883
      %1885 = vmatmul.bf16.gmra.mxu0 %v632
      %v1886 = vpop.f32.mrf.mxu0
      %v1887 = vadd.f32 %v1838, %v1886
      %v1888 = vpop.f32.mrf.mxu0
      %v1889 = vadd.f32 %v1840, %v1888
      %1890 = vmatmul.bf16.gmra.mxu0 %v639
      %v1891 = vpop.f32.mrf.mxu0
      %v1892 = vadd.f32 %v1843, %v1891
      %v1893 = vpop.f32.mrf.mxu0
      %v1894 = vadd.f32 %v1845, %v1893
      %1895 = vmatmul.bf16.gmra.mxu0 %v646
      %v1896 = vpop.f32.mrf.mxu0
      %v1897 = vadd.f32 %v1848, %v1896
      %v1898 = vpop.f32.mrf.mxu0
      %v1899 = vadd.f32 %v1850, %v1898
      %1900 = vdwg.mxu0
      %1901 = vmatpush.bf16.msra.mxu0 %v1151
      %1902 = vmatpush.bf16.msra.mxu0 %v1149
      %1903 = vmatpush.bf16.msra.mxu0 %v1147
      %1904 = vmatpush.bf16.msra.mxu0 %v1145
      %1905 = vmatpush.bf16.msra.mxu0 %v1143
      %1906 = vmatpush.bf16.msra.mxu0 %v1141
      %1907 = vmatpush.bf16.msra.mxu0 %v1139
      %1908 = vmatpush.bf16.msra.mxu0 %v1137
      %1909 = vmatmul.bf16.gmra.mxu0 %v598
      %v1910 = vpop.f32.mrf.mxu0
      %v1911 = vadd.f32 %v1862, %v1910
      %v1912 = vpop.f32.mrf.mxu0
      %v1913 = vadd.f32 %v1864, %v1912
      %1914 = vmatmul.bf16.gmra.mxu0 %v605
      %v1915 = vpop.f32.mrf.mxu0
      %v1916 = vadd.f32 %v1867, %v1915
      %v1917 = vpop.f32.mrf.mxu0
      %v1918 = vadd.f32 %v1869, %v1917
      %1919 = vmatmul.bf16.gmra.mxu0 %v612
      %v1920 = vpop.f32.mrf.mxu0
      %v1921 = vadd.f32 %v1872, %v1920
      %v1922 = vpop.f32.mrf.mxu0
      %v1923 = vadd.f32 %v1874, %v1922
      %1924 = vmatmul.bf16.gmra.mxu0 %v619
      %v1925 = vpop.f32.mrf.mxu0
      %v1926 = vadd.f32 %v1877, %v1925
      %v1927 = vpop.f32.mrf.mxu0
      %v1928 = vadd.f32 %v1879, %v1927
      %1929 = vmatmul.bf16.gmra.mxu0 %v626
      %v1930 = vpop.f32.mrf.mxu0
      %v1931 = vadd.f32 %v1882, %v1930
      %v1932 = vpop.f32.mrf.mxu0
      %v1933 = vadd.f32 %v1884, %v1932
      %1934 = vmatmul.bf16.gmra.mxu0 %v633
      %v1935 = vpop.f32.mrf.mxu0
      %v1936 = vadd.f32 %v1887, %v1935
      %v1937 = vpop.f32.mrf.mxu0
      %v1938 = vadd.f32 %v1889, %v1937
      %1939 = vmatmul.bf16.gmra.mxu0 %v640
      %v1940 = vpop.f32.mrf.mxu0
      %v1941 = vadd.f32 %v1892, %v1940
      %v1942 = vpop.f32.mrf.mxu0
      %v1943 = vadd.f32 %v1894, %v1942
      %1944 = vmatmul.bf16.gmra.mxu0 %v647
      %v1945 = vpop.f32.mrf.mxu0
      %v1946 = vadd.f32 %v1897, %v1945
      %v1947 = vpop.f32.mrf.mxu0
      %v1948 = vadd.f32 %v1899, %v1947
      %1949 = vdwg.mxu0
      %vm1950 = vcmp.gt.f32.partialorder %v1568, 0.0
      %vm1951 = vcmp.gt.f32.partialorder %v1911, 0.0
      %vm1952 = vcmp.gt.f32.partialorder %v1570, 0.0
      %vm1953 = vcmp.gt.f32.partialorder %v1913, 0.0
      %vm1954 = vcmp.gt.f32.partialorder %v1573, 0.0
      %vm1955 = vcmp.gt.f32.partialorder %v1916, 0.0
      %vm1956 = vcmp.gt.f32.partialorder %v1575, 0.0
      %vm1957 = vcmp.gt.f32.partialorder %v1918, 0.0
      %vm1958 = vcmp.gt.f32.partialorder %v1578, 0.0
      %vm1959 = vcmp.gt.f32.partialorder %v1921, 0.0
      %vm1960 = vcmp.gt.f32.partialorder %v1580, 0.0
      %vm1961 = vcmp.gt.f32.partialorder %v1923, 0.0
      %vm1962 = vcmp.gt.f32.partialorder %v1583, 0.0
      %vm1963 = vcmp.gt.f32.partialorder %v1926, 0.0
      %vm1964 = vcmp.gt.f32.partialorder %v1585, 0.0
      %vm1965 = vcmp.gt.f32.partialorder %v1928, 0.0
      %vm1966 = vcmp.gt.f32.partialorder %v1588, 0.0
      %vm1967 = vcmp.gt.f32.partialorder %v1931, 0.0
      %vm1968 = vcmp.gt.f32.partialorder %v1590, 0.0
      %vm1969 = vcmp.gt.f32.partialorder %v1933, 0.0
      %vm1970 = vcmp.gt.f32.partialorder %v1593, 0.0
      %vm1971 = vcmp.gt.f32.partialorder %v1936, 0.0
      %vm1972 = vcmp.gt.f32.partialorder %v1595, 0.0
      %vm1973 = vcmp.gt.f32.partialorder %v1938, 0.0
      %vm1974 = vcmp.gt.f32.partialorder %v1598, 0.0
      %vm1975 = vcmp.gt.f32.partialorder %v1941, 0.0
      %vm1976 = vcmp.gt.f32.partialorder %v1600, 0.0
      %vm1977 = vcmp.gt.f32.partialorder %v1943, 0.0
      %vm1978 = vcmp.gt.f32.partialorder %v1603, 0.0
      %vm1979 = vcmp.gt.f32.partialorder %v1946, 0.0
      %vm1980 = vcmp.gt.f32.partialorder %v1605, 0.0
      %vm1981 = vcmp.gt.f32.partialorder %v1948, 0.0
      %v1982 = vmul.f32 %v1568, 0.01
      %v1983 = vmul.f32 %v1911, 0.01
      %v1984 = vmul.f32 %v1570, 0.01
      %v1985 = vmul.f32 %v1913, 0.01
      %v1986 = vmul.f32 %v1573, 0.01
      %v1987 = vmul.f32 %v1916, 0.01
      %v1988 = vmul.f32 %v1575, 0.01
      %v1989 = vmul.f32 %v1918, 0.01
      %v1990 = vmul.f32 %v1578, 0.01
      %v1991 = vmul.f32 %v1921, 0.01
      %v1992 = vmul.f32 %v1580, 0.01
      %v1993 = vmul.f32 %v1923, 0.01
      %v1994 = vmul.f32 %v1583, 0.01
      %v1995 = vmul.f32 %v1926, 0.01
      %v1996 = vmul.f32 %v1585, 0.01
      %v1997 = vmul.f32 %v1928, 0.01
      %v1998 = vmul.f32 %v1588, 0.01
      %v1999 = vmul.f32 %v1931, 0.01
      %v2000 = vmul.f32 %v1590, 0.01
      %v2001 = vmul.f32 %v1933, 0.01
      %v2002 = vmul.f32 %v1593, 0.01
      %v2003 = vmul.f32 %v1936, 0.01
      %v2004 = vmul.f32 %v1595, 0.01
      %v2005 = vmul.f32 %v1938, 0.01
      %v2006 = vmul.f32 %v1598, 0.01
      %v2007 = vmul.f32 %v1941, 0.01
      %v2008 = vmul.f32 %v1600, 0.01
      %v2009 = vmul.f32 %v1943, 0.01
      %v2010 = vmul.f32 %v1603, 0.01
      %v2011 = vmul.f32 %v1946, 0.01
      %v2012 = vmul.f32 %v1605, 0.01
      %v2013 = vmul.f32 %v1948, 0.01
      %v2014 = vsel %vm1950, %v1568, %v1982
      %v2015 = vsel %vm1951, %v1911, %v1983
      %v2016 = vsel %vm1952, %v1570, %v1984
      %v2017 = vsel %vm1953, %v1913, %v1985
      %v2018 = vsel %vm1954, %v1573, %v1986
      %v2019 = vsel %vm1955, %v1916, %v1987
      %v2020 = vsel %vm1956, %v1575, %v1988
      %v2021 = vsel %vm1957, %v1918, %v1989
      %v2022 = vsel %vm1958, %v1578, %v1990
      %v2023 = vsel %vm1959, %v1921, %v1991
      %v2024 = vsel %vm1960, %v1580, %v1992
      %v2025 = vsel %vm1961, %v1923, %v1993
      %v2026 = vsel %vm1962, %v1583, %v1994
      %v2027 = vsel %vm1963, %v1926, %v1995
      %v2028 = vsel %vm1964, %v1585, %v1996
      %v2029 = vsel %vm1965, %v1928, %v1997
      %v2030 = vsel %vm1966, %v1588, %v1998
      %v2031 = vsel %vm1967, %v1931, %v1999
      %v2032 = vsel %vm1968, %v1590, %v2000
      %v2033 = vsel %vm1969, %v1933, %v2001
      %v2034 = vsel %vm1970, %v1593, %v2002
      %v2035 = vsel %vm1971, %v1936, %v2003
      %v2036 = vsel %vm1972, %v1595, %v2004
      %v2037 = vsel %vm1973, %v1938, %v2005
      %v2038 = vsel %vm1974, %v1598, %v2006
      %v2039 = vsel %vm1975, %v1941, %v2007
      %v2040 = vsel %vm1976, %v1600, %v2008
      %v2041 = vsel %vm1977, %v1943, %v2009
      %v2042 = vsel %vm1978, %v1603, %v2010
      %v2043 = vsel %vm1979, %v1946, %v2011
      %v2044 = vsel %vm1980, %v1605, %v2012
      %v2045 = vsel %vm1981, %v1948, %v2013
      %v2046 = vpack.c.bf16 %v2016, %v2014
      %v2047 = vpack.c.bf16 %v2017, %v2015
      %v2048 = vpack.c.bf16 %v2020, %v2018
      %v2049 = vpack.c.bf16 %v2021, %v2019
      %v2050 = vpack.c.bf16 %v2024, %v2022
      %v2051 = vpack.c.bf16 %v2025, %v2023
      %v2052 = vpack.c.bf16 %v2028, %v2026
      %v2053 = vpack.c.bf16 %v2029, %v2027
      %v2054 = vpack.c.bf16 %v2032, %v2030
      %v2055 = vpack.c.bf16 %v2033, %v2031
      %v2056 = vpack.c.bf16 %v2036, %v2034
      %v2057 = vpack.c.bf16 %v2037, %v2035
      %v2058 = vpack.c.bf16 %v2040, %v2038
      %v2059 = vpack.c.bf16 %v2041, %v2039
      %v2060 = vpack.c.bf16 %v2044, %v2042
      %v2061 = vpack.c.bf16 %v2045, %v2043
      %v2062 = vld [vmem:[%s3] sm:$0xff]
      %v2063 = vld [vmem:[%s3 + $0x8] sm:$0xff]
      %v2064 = vld [vmem:[%s3 + $0x10] sm:$0xff]
      %v2065 = vld [vmem:[%s3 + $0x18] sm:$0xff]
      %v2066 = vld [vmem:[%s3 + $0x20] sm:$0xff]
      %v2067 = vld [vmem:[%s3 + $0x28] sm:$0xff]
      %v2068 = vld [vmem:[%s3 + $0x30] sm:$0xff]
      %v2069 = vld [vmem:[%s3 + $0x38] sm:$0xff]
      %v2070 = vld [vmem:[%s3 + $0x40] sm:$0xff]
      %v2071 = vld [vmem:[%s3 + $0x48] sm:$0xff]
      %v2072 = vld [vmem:[%s3 + $0x50] sm:$0xff]
      %v2073 = vld [vmem:[%s3 + $0x58] sm:$0xff]
      %v2074 = vld [vmem:[%s3 + $0x60] sm:$0xff]
      %v2075 = vld [vmem:[%s3 + $0x68] sm:$0xff]
      %v2076 = vld [vmem:[%s3 + $0x70] sm:$0xff]
      %v2077 = vld [vmem:[%s3 + $0x78] sm:$0xff]
      %v2078 = vld [vmem:[%s3 + $0x80] sm:$0xff]
      %v2079 = vld [vmem:[%s3 + $0x88] sm:$0xff]
      %v2080 = vld [vmem:[%s3 + $0x90] sm:$0xff]
      %v2081 = vld [vmem:[%s3 + $0x98] sm:$0xff]
      %v2082 = vld [vmem:[%s3 + $0xa0] sm:$0xff]
      %v2083 = vld [vmem:[%s3 + $0xa8] sm:$0xff]
      %v2084 = vld [vmem:[%s3 + $0xb0] sm:$0xff]
      %v2085 = vld [vmem:[%s3 + $0xb8] sm:$0xff]
      %v2086 = vld [vmem:[%s4] sm:$0x3]
      %v2088 = vperm.slane %v2086, 0
      %v2089 = vperm.slane %v2086, 1
      %v2116 = vunpack.c.l.b16 %v2062
      %v2117 = vunpack.c.h.b16 %v2062
      %v2118 = vunpack.c.l.b16 %v2063
      %v2119 = vunpack.c.h.b16 %v2063
      %v2120 = vunpack.c.l.b16 %v2064
      %v2121 = vunpack.c.h.b16 %v2064
      %v2122 = vunpack.c.l.b16 %v2065
      %v2123 = vunpack.c.h.b16 %v2065
      %v2124 = vunpack.c.l.b16 %v2066
      %v2125 = vunpack.c.h.b16 %v2066
      %v2126 = vunpack.c.l.b16 %v2067
      %v2127 = vunpack.c.h.b16 %v2067
      %v2128 = vunpack.c.l.b16 %v2068
      %v2129 = vunpack.c.h.b16 %v2068
      %v2130 = vunpack.c.l.b16 %v2069
      %v2131 = vunpack.c.h.b16 %v2069
      %v2132 = vunpack.c.l.b16 %v2070
      %v2133 = vunpack.c.h.b16 %v2070
      %v2134 = vunpack.c.l.b16 %v2071
      %v2135 = vunpack.c.h.b16 %v2071
      %v2136 = vunpack.c.l.b16 %v2072
      %v2137 = vunpack.c.h.b16 %v2072
      %v2138 = vunpack.c.l.b16 %v2073
      %v2139 = vunpack.c.h.b16 %v2073
      %v2140 = vunpack.c.l.b16 %v2074
      %v2141 = vunpack.c.h.b16 %v2074
      %v2142 = vunpack.c.l.b16 %v2075
      %v2143 = vunpack.c.h.b16 %v2075
      %v2144 = vunpack.c.l.b16 %v2076
      %v2145 = vunpack.c.h.b16 %v2076
      %v2146 = vunpack.c.l.b16 %v2077
      %v2147 = vunpack.c.h.b16 %v2077
      %v2148 = vunpack.c.l.b16 %v2078
      %v2149 = vunpack.c.h.b16 %v2078
      %v2150 = vunpack.c.l.b16 %v2079
      %v2151 = vunpack.c.h.b16 %v2079
      %v2152 = vunpack.c.l.b16 %v2080
      %v2153 = vunpack.c.h.b16 %v2080
      %v2154 = vunpack.c.l.b16 %v2081
      %v2155 = vunpack.c.h.b16 %v2081
      %v2156 = vunpack.c.l.b16 %v2082
      %v2157 = vunpack.c.h.b16 %v2082
      %v2158 = vunpack.c.l.b16 %v2083
      %v2159 = vunpack.c.h.b16 %v2083
      %v2160 = vunpack.c.l.b16 %v2084
      %v2161 = vunpack.c.h.b16 %v2084
      %v2162 = vunpack.c.l.b16 %v2085
      %v2163 = vunpack.c.h.b16 %v2085
      %v2164 = vpack.c.b16 %v2118, %v2116
      %v2165 = vpack.c.b16 %v2119, %v2117
      %v2166 = vpack.c.b16 %v2122, %v2120
      %v2167 = vpack.c.b16 %v2123, %v2121
      %v2168 = vpack.c.b16 %v2126, %v2124
      %v2169 = vpack.c.b16 %v2127, %v2125
      %v2170 = vpack.c.b16 %v2130, %v2128
      %v2171 = vpack.c.b16 %v2131, %v2129
      %v2172 = vpack.c.b16 %v2134, %v2132
      %v2173 = vpack.c.b16 %v2135, %v2133
      %v2174 = vpack.c.b16 %v2138, %v2136
      %v2175 = vpack.c.b16 %v2139, %v2137
      %v2176 = vpack.c.b16 %v2142, %v2140
      %v2177 = vpack.c.b16 %v2143, %v2141
      %v2178 = vpack.c.b16 %v2146, %v2144
      %v2179 = vpack.c.b16 %v2147, %v2145
      %v2180 = vpack.c.b16 %v2150, %v2148
      %v2181 = vpack.c.b16 %v2151, %v2149
      %v2182 = vpack.c.b16 %v2154, %v2152
      %v2183 = vpack.c.b16 %v2155, %v2153
      %v2184 = vpack.c.b16 %v2158, %v2156
      %v2185 = vpack.c.b16 %v2159, %v2157
      %v2186 = vpack.c.b16 %v2162, %v2160
      %v2187 = vpack.c.b16 %v2163, %v2161
      %vm2212 = vcmask 523264
      %v2214 = vsel %vm2212, %v2047, 0
      %v2217 = vsel %vm2212, %v2049, 0
      %v2220 = vsel %vm2212, %v2051, 0
      %v2223 = vsel %vm2212, %v2053, 0
      %v2226 = vsel %vm2212, %v2055, 0
      %v2229 = vsel %vm2212, %v2057, 0
      %v2232 = vsel %vm2212, %v2059, 0
      %v2235 = vsel %vm2212, %v2061, 0
      %2237 = vmatpush.bf16.msra.mxu0 %v2178
      %2238 = vmatpush.bf16.msra.mxu0 %v2176
      %2239 = vmatpush.bf16.msra.mxu0 %v2174
      %2240 = vmatpush.bf16.msra.mxu0 %v2172
      %2241 = vmatpush.bf16.msra.mxu0 %v2170
      %2242 = vmatpush.bf16.msra.mxu0 %v2168
      %2243 = vmatpush.bf16.msra.mxu0 %v2166
      %2244 = vmatpush.bf16.msra.mxu0 %v2164
      %2245 = vmatmul.bf16.gmra.mxu0 %v2046
      %v2246 = vpop.f32.mrf.mxu0
      %v2247 = vadd.f32 %v2088, %v2246
      %v2248 = vpop.f32.mrf.mxu0
      %v2249 = vadd.f32 %v2088, %v2248
      %2250 = vmatmul.bf16.gmra.mxu0 %v2048
      %v2251 = vpop.f32.mrf.mxu0
      %v2252 = vadd.f32 %v2088, %v2251
      %v2253 = vpop.f32.mrf.mxu0
      %v2254 = vadd.f32 %v2088, %v2253
      %2255 = vmatmul.bf16.gmra.mxu0 %v2050
      %v2256 = vpop.f32.mrf.mxu0
      %v2257 = vadd.f32 %v2088, %v2256
      %v2258 = vpop.f32.mrf.mxu0
      %v2259 = vadd.f32 %v2088, %v2258
      %2260 = vmatmul.bf16.gmra.mxu0 %v2052
      %v2261 = vpop.f32.mrf.mxu0
      %v2262 = vadd.f32 %v2088, %v2261
      %v2263 = vpop.f32.mrf.mxu0
      %v2264 = vadd.f32 %v2088, %v2263
      %2265 = vmatmul.bf16.gmra.mxu0 %v2054
      %v2266 = vpop.f32.mrf.mxu0
      %v2267 = vadd.f32 %v2088, %v2266
      %v2268 = vpop.f32.mrf.mxu0
      %v2269 = vadd.f32 %v2088, %v2268
      %2270 = vmatmul.bf16.gmra.mxu0 %v2056
      %v2271 = vpop.f32.mrf.mxu0
      %v2272 = vadd.f32 %v2088, %v2271
      %v2273 = vpop.f32.mrf.mxu0
      %v2274 = vadd.f32 %v2088, %v2273
      %2275 = vmatmul.bf16.gmra.mxu0 %v2058
      %v2276 = vpop.f32.mrf.mxu0
      %v2277 = vadd.f32 %v2088, %v2276
      %v2278 = vpop.f32.mrf.mxu0
      %v2279 = vadd.f32 %v2088, %v2278
      %2280 = vmatmul.bf16.gmra.mxu0 %v2060
      %v2281 = vpop.f32.mrf.mxu0
      %v2282 = vadd.f32 %v2088, %v2281
      %v2283 = vpop.f32.mrf.mxu0
      %v2284 = vadd.f32 %v2088, %v2283
      %2285 = vdwg.mxu0
      %2286 = vmatpush.bf16.msra.mxu0 0
      %2287 = vmatpush.bf16.msra.mxu0 0
      %2288 = vmatpush.bf16.msra.mxu0 0
      %2289 = vmatpush.bf16.msra.mxu0 0
      %2290 = vmatpush.bf16.msra.mxu0 %v2186
      %2291 = vmatpush.bf16.msra.mxu0 %v2184
      %2292 = vmatpush.bf16.msra.mxu0 %v2182
      %2293 = vmatpush.bf16.msra.mxu0 %v2180
      %2294 = vmatmul.bf16.gmra.mxu0 %v2214
      %v2295 = vpop.f32.mrf.mxu0
      %v2296 = vadd.f32 %v2247, %v2295
      %v2297 = vpop.f32.mrf.mxu0
      %v2298 = vadd.f32 %v2249, %v2297
      %2299 = vmatmul.bf16.gmra.mxu0 %v2217
      %v2300 = vpop.f32.mrf.mxu0
      %v2301 = vadd.f32 %v2252, %v2300
      %v2302 = vpop.f32.mrf.mxu0
      %v2303 = vadd.f32 %v2254, %v2302
      %2304 = vmatmul.bf16.gmra.mxu0 %v2220
      %v2305 = vpop.f32.mrf.mxu0
      %v2306 = vadd.f32 %v2257, %v2305
      %v2307 = vpop.f32.mrf.mxu0
      %v2308 = vadd.f32 %v2259, %v2307
      %2309 = vmatmul.bf16.gmra.mxu0 %v2223
      %v2310 = vpop.f32.mrf.mxu0
      %v2311 = vadd.f32 %v2262, %v2310
      %v2312 = vpop.f32.mrf.mxu0
      %v2313 = vadd.f32 %v2264, %v2312
      %2314 = vmatmul.bf16.gmra.mxu0 %v2226
      %v2315 = vpop.f32.mrf.mxu0
      %v2316 = vadd.f32 %v2267, %v2315
      %v2317 = vpop.f32.mrf.mxu0
      %v2318 = vadd.f32 %v2269, %v2317
      %2319 = vmatmul.bf16.gmra.mxu0 %v2229
      %v2320 = vpop.f32.mrf.mxu0
      %v2321 = vadd.f32 %v2272, %v2320
      %v2322 = vpop.f32.mrf.mxu0
      %v2323 = vadd.f32 %v2274, %v2322
      %2324 = vmatmul.bf16.gmra.mxu0 %v2232
      %v2325 = vpop.f32.mrf.mxu0
      %v2326 = vadd.f32 %v2277, %v2325
      %v2327 = vpop.f32.mrf.mxu0
      %v2328 = vadd.f32 %v2279, %v2327
      %2329 = vmatmul.bf16.gmra.mxu0 %v2235
      %v2330 = vpop.f32.mrf.mxu0
      %v2331 = vadd.f32 %v2282, %v2330
      %v2332 = vpop.f32.mrf.mxu0
      %v2333 = vadd.f32 %v2284, %v2332
      %2334 = vdwg.mxu0
      %2335 = vmatpush.bf16.msra.mxu0 %v2179
      %2336 = vmatpush.bf16.msra.mxu0 %v2177
      %2337 = vmatpush.bf16.msra.mxu0 %v2175
      %2338 = vmatpush.bf16.msra.mxu0 %v2173
      %2339 = vmatpush.bf16.msra.mxu0 %v2171
      %2340 = vmatpush.bf16.msra.mxu0 %v2169
      %2341 = vmatpush.bf16.msra.mxu0 %v2167
      %2342 = vmatpush.bf16.msra.mxu0 %v2165
      %2343 = vmatmul.bf16.gmra.mxu0 %v2046
      %v2344 = vpop.f32.mrf.mxu0
      %v2345 = vadd.f32 %v2089, %v2344
      %v2346 = vpop.f32.mrf.mxu0
      %v2347 = vadd.f32 %v2089, %v2346
      %2348 = vmatmul.bf16.gmra.mxu0 %v2048
      %v2349 = vpop.f32.mrf.mxu0
      %v2350 = vadd.f32 %v2089, %v2349
      %v2351 = vpop.f32.mrf.mxu0
      %v2352 = vadd.f32 %v2089, %v2351
      %2353 = vmatmul.bf16.gmra.mxu0 %v2050
      %v2354 = vpop.f32.mrf.mxu0
      %v2355 = vadd.f32 %v2089, %v2354
      %v2356 = vpop.f32.mrf.mxu0
      %v2357 = vadd.f32 %v2089, %v2356
      %2358 = vmatmul.bf16.gmra.mxu0 %v2052
      %v2359 = vpop.f32.mrf.mxu0
      %v2360 = vadd.f32 %v2089, %v2359
      %v2361 = vpop.f32.mrf.mxu0
      %v2362 = vadd.f32 %v2089, %v2361
      %2363 = vmatmul.bf16.gmra.mxu0 %v2054
      %v2364 = vpop.f32.mrf.mxu0
      %v2365 = vadd.f32 %v2089, %v2364
      %v2366 = vpop.f32.mrf.mxu0
      %v2367 = vadd.f32 %v2089, %v2366
      %2368 = vmatmul.bf16.gmra.mxu0 %v2056
      %v2369 = vpop.f32.mrf.mxu0
      %v2370 = vadd.f32 %v2089, %v2369
      %v2371 = vpop.f32.mrf.mxu0
      %v2372 = vadd.f32 %v2089, %v2371
      %2373 = vmatmul.bf16.gmra.mxu0 %v2058
      %v2374 = vpop.f32.mrf.mxu0
      %v2375 = vadd.f32 %v2089, %v2374
      %v2376 = vpop.f32.mrf.mxu0
      %v2377 = vadd.f32 %v2089, %v2376
      %2378 = vmatmul.bf16.gmra.mxu0 %v2060
      %v2379 = vpop.f32.mrf.mxu0
      %v2380 = vadd.f32 %v2089, %v2379
      %v2381 = vpop.f32.mrf.mxu0
      %v2382 = vadd.f32 %v2089, %v2381
      %2383 = vdwg.mxu0
      %2384 = vmatpush.bf16.msra.mxu0 0
      %2385 = vmatpush.bf16.msra.mxu0 0
      %2386 = vmatpush.bf16.msra.mxu0 0
      %2387 = vmatpush.bf16.msra.mxu0 0
      %2388 = vmatpush.bf16.msra.mxu0 %v2187
      %2389 = vmatpush.bf16.msra.mxu0 %v2185
      %2390 = vmatpush.bf16.msra.mxu0 %v2183
      %2391 = vmatpush.bf16.msra.mxu0 %v2181
      %2392 = vmatmul.bf16.gmra.mxu0 %v2214
      %v2393 = vpop.f32.mrf.mxu0
      %v2394 = vadd.f32 %v2345, %v2393
      %v2395 = vpop.f32.mrf.mxu0
      %v2396 = vadd.f32 %v2347, %v2395
      %2397 = vmatmul.bf16.gmra.mxu0 %v2217
      %v2398 = vpop.f32.mrf.mxu0
      %v2399 = vadd.f32 %v2350, %v2398
      %v2400 = vpop.f32.mrf.mxu0
      %v2401 = vadd.f32 %v2352, %v2400
      %2402 = vmatmul.bf16.gmra.mxu0 %v2220
      %v2403 = vpop.f32.mrf.mxu0
      %v2404 = vadd.f32 %v2355, %v2403
      %v2405 = vpop.f32.mrf.mxu0
      %v2406 = vadd.f32 %v2357, %v2405
      %2407 = vmatmul.bf16.gmra.mxu0 %v2223
      %v2408 = vpop.f32.mrf.mxu0
      %v2409 = vadd.f32 %v2360, %v2408
      %v2410 = vpop.f32.mrf.mxu0
      %v2411 = vadd.f32 %v2362, %v2410
      %2412 = vmatmul.bf16.gmra.mxu0 %v2226
      %v2413 = vpop.f32.mrf.mxu0
      %v2414 = vadd.f32 %v2365, %v2413
      %v2415 = vpop.f32.mrf.mxu0
      %v2416 = vadd.f32 %v2367, %v2415
      %2417 = vmatmul.bf16.gmra.mxu0 %v2229
      %v2418 = vpop.f32.mrf.mxu0
      %v2419 = vadd.f32 %v2370, %v2418
      %v2420 = vpop.f32.mrf.mxu0
      %v2421 = vadd.f32 %v2372, %v2420
      %2422 = vmatmul.bf16.gmra.mxu0 %v2232
      %v2423 = vpop.f32.mrf.mxu0
      %v2424 = vadd.f32 %v2375, %v2423
      %v2425 = vpop.f32.mrf.mxu0
      %v2426 = vadd.f32 %v2377, %v2425
      %2427 = vmatmul.bf16.gmra.mxu0 %v2235
      %v2428 = vpop.f32.mrf.mxu0
      %v2429 = vadd.f32 %v2380, %v2428
      %v2430 = vpop.f32.mrf.mxu0
      %v2431 = vadd.f32 %v2382, %v2430
      %2432 = vdwg.mxu0
      %vm2433 = vcmp.gt.f32.partialorder %v2296, 0.0
      %vm2434 = vcmp.gt.f32.partialorder %v2394, 0.0
      %vm2435 = vcmp.gt.f32.partialorder %v2298, 0.0
      %vm2436 = vcmp.gt.f32.partialorder %v2396, 0.0
      %vm2437 = vcmp.gt.f32.partialorder %v2301, 0.0
      %vm2438 = vcmp.gt.f32.partialorder %v2399, 0.0
      %vm2439 = vcmp.gt.f32.partialorder %v2303, 0.0
      %vm2440 = vcmp.gt.f32.partialorder %v2401, 0.0
      %vm2441 = vcmp.gt.f32.partialorder %v2306, 0.0
      %vm2442 = vcmp.gt.f32.partialorder %v2404, 0.0
      %vm2443 = vcmp.gt.f32.partialorder %v2308, 0.0
      %vm2444 = vcmp.gt.f32.partialorder %v2406, 0.0
      %vm2445 = vcmp.gt.f32.partialorder %v2311, 0.0
      %vm2446 = vcmp.gt.f32.partialorder %v2409, 0.0
      %vm2447 = vcmp.gt.f32.partialorder %v2313, 0.0
      %vm2448 = vcmp.gt.f32.partialorder %v2411, 0.0
      %vm2449 = vcmp.gt.f32.partialorder %v2316, 0.0
      %vm2450 = vcmp.gt.f32.partialorder %v2414, 0.0
      %vm2451 = vcmp.gt.f32.partialorder %v2318, 0.0
      %vm2452 = vcmp.gt.f32.partialorder %v2416, 0.0
      %vm2453 = vcmp.gt.f32.partialorder %v2321, 0.0
      %vm2454 = vcmp.gt.f32.partialorder %v2419, 0.0
      %vm2455 = vcmp.gt.f32.partialorder %v2323, 0.0
      %vm2456 = vcmp.gt.f32.partialorder %v2421, 0.0
      %vm2457 = vcmp.gt.f32.partialorder %v2326, 0.0
      %vm2458 = vcmp.gt.f32.partialorder %v2424, 0.0
      %vm2459 = vcmp.gt.f32.partialorder %v2328, 0.0
      %vm2460 = vcmp.gt.f32.partialorder %v2426, 0.0
      %vm2461 = vcmp.gt.f32.partialorder %v2331, 0.0
      %vm2462 = vcmp.gt.f32.partialorder %v2429, 0.0
      %vm2463 = vcmp.gt.f32.partialorder %v2333, 0.0
      %vm2464 = vcmp.gt.f32.partialorder %v2431, 0.0
      %v2465 = vmul.f32 %v2296, 0.01
      %v2466 = vmul.f32 %v2394, 0.01
      %v2467 = vmul.f32 %v2298, 0.01
      %v2468 = vmul.f32 %v2396, 0.01
      %v2469 = vmul.f32 %v2301, 0.01
      %v2470 = vmul.f32 %v2399, 0.01
      %v2471 = vmul.f32 %v2303, 0.01
      %v2472 = vmul.f32 %v2401, 0.01
      %v2473 = vmul.f32 %v2306, 0.01
      %v2474 = vmul.f32 %v2404, 0.01
      %v2475 = vmul.f32 %v2308, 0.01
      %v2476 = vmul.f32 %v2406, 0.01
      %v2477 = vmul.f32 %v2311, 0.01
      %v2478 = vmul.f32 %v2409, 0.01
      %v2479 = vmul.f32 %v2313, 0.01
      %v2480 = vmul.f32 %v2411, 0.01
      %v2481 = vmul.f32 %v2316, 0.01
      %v2482 = vmul.f32 %v2414, 0.01
      %v2483 = vmul.f32 %v2318, 0.01
      %v2484 = vmul.f32 %v2416, 0.01
      %v2485 = vmul.f32 %v2321, 0.01
      %v2486 = vmul.f32 %v2419, 0.01
      %v2487 = vmul.f32 %v2323, 0.01
      %v2488 = vmul.f32 %v2421, 0.01
      %v2489 = vmul.f32 %v2326, 0.01
      %v2490 = vmul.f32 %v2424, 0.01
      %v2491 = vmul.f32 %v2328, 0.01
      %v2492 = vmul.f32 %v2426, 0.01
      %v2493 = vmul.f32 %v2331, 0.01
      %v2494 = vmul.f32 %v2429, 0.01
      %v2495 = vmul.f32 %v2333, 0.01
      %v2496 = vmul.f32 %v2431, 0.01
      %v2497 = vsel %vm2433, %v2296, %v2465
      %v2498 = vsel %vm2434, %v2394, %v2466
      %v2499 = vsel %vm2435, %v2298, %v2467
      %v2500 = vsel %vm2436, %v2396, %v2468
      %v2501 = vsel %vm2437, %v2301, %v2469
      %v2502 = vsel %vm2438, %v2399, %v2470
      %v2503 = vsel %vm2439, %v2303, %v2471
      %v2504 = vsel %vm2440, %v2401, %v2472
      %v2505 = vsel %vm2441, %v2306, %v2473
      %v2506 = vsel %vm2442, %v2404, %v2474
      %v2507 = vsel %vm2443, %v2308, %v2475
      %v2508 = vsel %vm2444, %v2406, %v2476
      %v2509 = vsel %vm2445, %v2311, %v2477
      %v2510 = vsel %vm2446, %v2409, %v2478
      %v2511 = vsel %vm2447, %v2313, %v2479
      %v2512 = vsel %vm2448, %v2411, %v2480
      %v2513 = vsel %vm2449, %v2316, %v2481
      %v2514 = vsel %vm2450, %v2414, %v2482
      %v2515 = vsel %vm2451, %v2318, %v2483
      %v2516 = vsel %vm2452, %v2416, %v2484
      %v2517 = vsel %vm2453, %v2321, %v2485
      %v2518 = vsel %vm2454, %v2419, %v2486
      %v2519 = vsel %vm2455, %v2323, %v2487
      %v2520 = vsel %vm2456, %v2421, %v2488
      %v2521 = vsel %vm2457, %v2326, %v2489
      %v2522 = vsel %vm2458, %v2424, %v2490
      %v2523 = vsel %vm2459, %v2328, %v2491
      %v2524 = vsel %vm2460, %v2426, %v2492
      %v2525 = vsel %vm2461, %v2331, %v2493
      %v2526 = vsel %vm2462, %v2429, %v2494
      %v2527 = vsel %vm2463, %v2333, %v2495
      %v2528 = vsel %vm2464, %v2431, %v2496
      %v2529 = vpack.c.bf16 %v2498, %v2497
      %v2530 = vpack.c.bf16 %v2500, %v2499
      %v2531 = vpack.c.bf16 %v2502, %v2501
      %v2532 = vpack.c.bf16 %v2504, %v2503
      %v2533 = vpack.c.bf16 %v2506, %v2505
      %v2534 = vpack.c.bf16 %v2508, %v2507
      %v2535 = vpack.c.bf16 %v2510, %v2509
      %v2536 = vpack.c.bf16 %v2512, %v2511
      %v2537 = vpack.c.bf16 %v2514, %v2513
      %v2538 = vpack.c.bf16 %v2516, %v2515
      %v2539 = vpack.c.bf16 %v2518, %v2517
      %v2540 = vpack.c.bf16 %v2520, %v2519
      %v2541 = vpack.c.bf16 %v2522, %v2521
      %v2542 = vpack.c.bf16 %v2524, %v2523
      %v2543 = vpack.c.bf16 %v2526, %v2525
      %v2544 = vpack.c.bf16 %v2528, %v2527
      %vm2545 = vcmask 1043456
      %vm2546 = vcmask 523268
      %vm2547 = vmor %vm2546, %vm2545
      %2548 = vst.msk [vmem:[%s231] sm:$0xff] %vm2547, %v2529
      %2549 = vst.msk [vmem:[%s231 + $0x8] sm:$0xff] %vm2547, %v2530
      %2550 = vst.msk [vmem:[%s231 + $0x10] sm:$0xff] %vm2547, %v2531
      %2551 = vst.msk [vmem:[%s231 + $0x18] sm:$0xff] %vm2547, %v2532
      %2552 = vst.msk [vmem:[%s231 + $0x20] sm:$0xff] %vm2547, %v2533
      %2553 = vst.msk [vmem:[%s231 + $0x28] sm:$0xff] %vm2547, %v2534
      %2554 = vst.msk [vmem:[%s231 + $0x30] sm:$0xff] %vm2547, %v2535
      %2555 = vst.msk [vmem:[%s231 + $0x38] sm:$0xff] %vm2547, %v2536
      %2556 = vst.msk [vmem:[%s231 + $0x40] sm:$0xff] %vm2547, %v2537
      %2557 = vst.msk [vmem:[%s231 + $0x48] sm:$0xff] %vm2547, %v2538
      %2558 = vst.msk [vmem:[%s231 + $0x50] sm:$0xff] %vm2547, %v2539
      %2559 = vst.msk [vmem:[%s231 + $0x58] sm:$0xff] %vm2547, %v2540
      %2560 = vst.msk [vmem:[%s231 + $0x60] sm:$0xff] %vm2547, %v2541
      %2561 = vst.msk [vmem:[%s231 + $0x68] sm:$0xff] %vm2547, %v2542
      %2562 = vst.msk [vmem:[%s231 + $0x70] sm:$0xff] %vm2547, %v2543
      %2563 = vst.msk [vmem:[%s231 + $0x78] sm:$0xff] %vm2547, %v2544
      %s2564 = smul.u32 16, %s16
      %p2565 = scmp.lt.s32.totalorder %s2564, 31
      %s2566 = scalar_select %p2565, %s2564, 31
      %s2567 = smul.addr %s2566, 2
      %s2568 = smul.addr %s2567, 4
      %s2569 = scalar_lea.vmem %s5, %s2568
      // Predicated region
      $region41: #{tpu_custom_call.1} parent=39 // pred_check
        %p2570 = pneg %p144
      $region42: #{tpu_custom_call.1} parent=39 // pred_check_branch
        %2572 = sbr.rel (%p2570) target = $region44
      $region43: #{tpu_custom_call.1} parent=39 // pred_region
        %s2573 = smul.u32 16, %s16
      $region44: #{tpu_custom_call.1} parent=39 // pred_fallthru
        _
    $region40: #{tpu_custom_call.1} parent=5 // pred_fallthru
      _
    %p2574 = scmp.le.s32.totalorder 2, %s11
    // Predicated region
    $region45: #{tpu_custom_call.1} parent=5 // pred_check
      %p2575 = pneg %p2574
    $region46: #{tpu_custom_call.1} parent=5 // pred_check_branch
      %2577 = sbr.rel (%p2575) target = $region48
    $region47: #{tpu_custom_call.1} parent=5 // pred_region
      %s2578 = ssub.s32 %s11, 2
      // Predicated region
      $region49: #{tpu_custom_call.1} parent=47 // pred_check
        %p2579 = pneg %p150
      $region50: #{tpu_custom_call.1} parent=47 // pred_check_branch
        %2581 = sbr.rel (%p2579) target = $region52
      $region51: #{tpu_custom_call.1} parent=47 // pred_region
        %s2582 = smul.u32 16, %s17
        %p2583 = scmp.lt.s32.totalorder %s2582, 31
        %s2584 = scalar_select %p2583, %s2582, 31
        %s2585 = smul.addr %s2584, 2
        %s2586 = smul.addr %s2585, 4
        %s2587 = scalar_lea.vmem %s5, %s2586
      $region52: #{tpu_custom_call.1} parent=47 // pred_fallthru
        _
    $region48: #{tpu_custom_call.1} parent=5 // pred_fallthru
      _
  $region6: #{tpu_custom_call.1} parent=0 // loop_footer
    %s15 = sadd.s32 1, %s11
  $region7: #{tpu_custom_call.1} parent=0 // loop_footer_branch
    %10 = sbr.rel target = $region3
  $region8: #{tpu_custom_call.1} parent=0 // loop_exit
    _

</llo_original>
